<compile_context>
chip_gen: v6e
topology: v6e:2x2x1
jax: 0.10.0
libtpu: 0.0.40
codegen_flags: <defaults>
</compile_context>

<pallas_src>
import functools

import jax
import jax.numpy as jnp
from jax.experimental import pallas as pl
from jax.experimental.pallas import tpu as pltpu

LN_EPS = 1e-5        # PyTorch nn.LayerNorm default
PHI_LANES = 128      # lane-dense width for the phi output (unmasked stores)


def _integration_kernel(
    x_ref,      # (TM, H)        compute dtype (bf16 or f32)
    w1_ref,     # (H, 2H)        compute dtype
    b1_ref,     # (1, 2H)        f32
    w2_ref,     # (2H, H)        compute dtype
    b2_ref,     # (1, H)         f32
    gamma_ref,  # (1, H)         f32
    beta_ref,   # (1, H)         f32
    w3_ref,     # (H, H//2)      compute dtype
    b3_ref,     # (1, H//2)      f32
    w4_ref,     # (1, H//2)      f32  (final Linear as a row; reduced on VPU/XLU)
    b4_ref,     # (1, 1)         f32
    integrated_ref,  # out: (TM, H)
    phi_ref,         # out: (TM, PHI_LANES), value broadcast across lanes
):
    cdt = w1_ref.dtype

    # --- integration_network: Linear(H,2H) -> ReLU -> Dropout(no-op) -> Linear(2H,H) -> LayerNorm ---
    h = jnp.dot(x_ref[...], w1_ref[...], preferred_element_type=jnp.float32)
    h = jnp.maximum(h + b1_ref[...], 0.0)
    y = jnp.dot(h.astype(cdt), w2_ref[...], preferred_element_type=jnp.float32)
    y = y + b2_ref[...]

    mean = jnp.mean(y, axis=-1, keepdims=True)
    centered = y - mean
    var = jnp.mean(centered * centered, axis=-1, keepdims=True)
    inv_std = jax.lax.rsqrt(var + LN_EPS)
    integrated = centered * inv_std * gamma_ref[...] + beta_ref[...]
    integrated_ref[...] = integrated.astype(integrated_ref.dtype)

    # --- phi_network: Linear(H, H//2) -> ReLU -> Linear(H//2, 1) -> Sigmoid ---
    p = jnp.dot(integrated.astype(cdt), w3_ref[...], preferred_element_type=jnp.float32)
    p = jnp.maximum(p + b3_ref[...], 0.0)
    # Single-output-column Linear as elementwise multiply + lane reduce
    # (avoids wasting a whole MXU pass on a 1-column matmul).
    logit = jnp.sum(p * w4_ref[...], axis=-1, keepdims=True) + b4_ref[...]
    phi = jax.nn.sigmoid(logit)
    # Lane-dense store: broadcast the per-row scalar across 128 lanes so the
    # store is an unmasked full-width vst; wrapper slices column 0.
    phi_ref[...] = jnp.broadcast_to(phi, phi_ref.shape).astype(phi_ref.dtype)


@functools.partial(jax.jit, static_argnames=("tile_m", "compute_dtype"))
def information_integration(x, params, tile_m=256, compute_dtype=jnp.bfloat16):
    """x: (B, S, H) float32. Returns (integrated (B,S,H), phi (B,S,1))."""
    B, S, H = x.shape
    N = B * S
    (w1, b1, w2, b2, gamma, beta, w3, b3, w4, b4) = params

    # Pad rows to a multiple of tile_m so arbitrary (B, S) works with large tiles.
    n_pad = ((N + tile_m - 1) // tile_m) * tile_m
    x2d = x.reshape(N, H)
    if n_pad != N:
        x2d = jnp.pad(x2d, ((0, n_pad - N), (0, 0)))

    # Matmul operands in compute dtype (bf16 on MXU, f32 accumulation).
    # Biases, LayerNorm params and the final reduction weights stay f32.
    x2d = x2d.astype(compute_dtype)
    w1c = w1.astype(compute_dtype)
    w2c = w2.astype(compute_dtype)
    w3c = w3.astype(compute_dtype)

    b1r = b1.reshape(1, -1).astype(jnp.float32)
    b2r = b2.reshape(1, -1).astype(jnp.float32)
    gr = gamma.reshape(1, -1).astype(jnp.float32)
    br = beta.reshape(1, -1).astype(jnp.float32)
    b3r = b3.reshape(1, -1).astype(jnp.float32)
    w4r = w4.reshape(1, -1).astype(jnp.float32)   # (1, H//2)
    b4r = b4.reshape(1, 1).astype(jnp.float32)

    grid = (n_pad // tile_m,)

    # Grid-invariant weights/biases: full-array block with a constant block
    # index, so Pallas only DMAs them once across the whole grid.
    # TODO(synk): single-buffer these (pl.Buffered(1)) to halve weight VMEM once
    # single-buffered input pipelining is confirmed supported; also consider
    # lane-packing multiple problems when H << 128.
    full = lambda arr: pl.BlockSpec(arr.shape, lambda i: (0, 0))

    integrated2d, phi2d = pl.pallas_call(
        _integration_kernel,
        out_shape=(
            jax.ShapeDtypeStruct((n_pad, H), x.dtype),
            jax.ShapeDtypeStruct((n_pad, PHI_LANES), x.dtype),
        ),
        grid_spec=pltpu.PrefetchScalarGridSpec(
            num_scalar_prefetch=0,
            grid=grid,
            in_specs=[
                pl.BlockSpec((tile_m, H), lambda i: (i, 0)),  # x row tile
                full(w1c), full(b1r), full(w2c), full(b2r),
                full(gr), full(br),
                full(w3c), full(b3r), full(w4r), full(b4r),
            ],
            out_specs=[
                pl.BlockSpec((tile_m, H), lambda i: (i, 0)),
                pl.BlockSpec((tile_m, PHI_LANES), lambda i: (i, 0)),
            ],
        ),
        compiler_params=pltpu.CompilerParams(
            dimension_semantics=("parallel",),   # row tiles shard across v7x's 2 TCs
            vmem_limit_bytes=64 * 1024 * 1024,
        ),
    )(x2d, w1c, b1r, w2c, b2r, gr, br, w3c, b3r, w4r, b4r)

    integrated = integrated2d[:N].reshape(B, S, H)
    phi = phi2d[:N, :1].reshape(B, S, 1)
    return integrated, phi


def init_params(key, hidden_dim):
    """Deterministic synthetic parameters matching the module's __init__ shapes."""
    H = hidden_dim
    ks = jax.random.split(key, 8)
    # Stored as (in_features, out_features) so the kernel does x @ W + b
    # (equivalent to PyTorch's x @ W.T with W of shape (out, in)).
    w1 = jax.random.normal(ks[0], (H, 2 * H), jnp.float32) * 0.05
    b1 = jax.random.normal(ks[1], (2 * H,), jnp.float32) * 0.01
    w2 = jax.random.normal(ks[2], (2 * H, H), jnp.float32) * 0.05
    b2 = jax.random.normal(ks[3], (H,), jnp.float32) * 0.01
    gamma = jnp.ones((H,), jnp.float32)
    beta = jnp.zeros((H,), jnp.float32)
    w3 = jax.random.normal(ks[4], (H, H // 2), jnp.float32) * 0.05
    b3 = jax.random.normal(ks[5], (H // 2,), jnp.float32) * 0.01
    w4 = jax.random.normal(ks[6], (H // 2, 1), jnp.float32) * 0.05
    b4 = jax.random.normal(ks[7], (1,), jnp.float32) * 0.01
    return (w1, b1, w2, b2, gamma, beta, w3, b3, w4, b4)


def _reference(x, params, compute_dtype=jnp.bfloat16):
    """Plain-JAX reference matching the PyTorch forward (deterministic=True),
    mirroring the kernel's bf16 matmul operands / f32 accumulation."""
    (w1, b1, w2, b2, gamma, beta, w3, b3, w4, b4) = params
    cd = compute_dtype
    h = jnp.dot(x.astype(cd), w1.astype(cd), preferred_element_type=jnp.float32) + b1
    h = jnp.maximum(h, 0.0)
    y = jnp.dot(h.astype(cd), w2.astype(cd), preferred_element_type=jnp.float32) + b2
    mean = y.mean(-1, keepdims=True)
    var = ((y - mean) ** 2).mean(-1, keepdims=True)
    integrated = (y - mean) * jax.lax.rsqrt(var + LN_EPS) * gamma + beta
    p = jnp.dot(integrated.astype(cd), w3.astype(cd),
                preferred_element_type=jnp.float32) + b3
    p = jnp.maximum(p, 0.0)
    phi = jax.nn.sigmoid(p @ w4 + b4)
    return integrated, phi


if __name__ == "__main__":
    key = jax.random.PRNGKey(0)
    k_x, k_p = jax.random.split(key)

    B, S, H = 2, 8, 32  # batch=2, seq=8, hidden=32
    num_modules = 4     # unused in forward (matches module semantics)

    x = jax.random.normal(k_x, (B, S, H), jnp.float32)
    params = init_params(k_p, H)

    integrated, phi = information_integration(x, params)
    integrated = jax.block_until_ready(integrated)
    phi = jax.block_until_ready(phi)

    ref_int, ref_phi = _reference(x, params)
    assert integrated.shape == (B, S, H)
    assert phi.shape == (B, S, 1)
    assert jnp.allclose(integrated, ref_int, atol=2e-2, rtol=2e-2), float(
        jnp.max(jnp.abs(integrated - ref_int)))
    assert jnp.allclose(phi, ref_phi, atol=2e-2, rtol=2e-2), float(
        jnp.max(jnp.abs(phi - ref_phi)))

    print("KERNEL_OK")
</pallas_src>

<mosaic_0001>
module attributes {stable_mosaic.version = 11 : i64} {
  func.func @_integration_kernel(%arg0: i32, %arg1: memref<256x32xbf16, #tpu.memory_space<vmem>>, %arg2: memref<32x64xbf16, #tpu.memory_space<vmem>>, %arg3: memref<1x64xf32, #tpu.memory_space<vmem>>, %arg4: memref<64x32xbf16, #tpu.memory_space<vmem>>, %arg5: memref<1x32xf32, #tpu.memory_space<vmem>>, %arg6: memref<1x32xf32, #tpu.memory_space<vmem>>, %arg7: memref<1x32xf32, #tpu.memory_space<vmem>>, %arg8: memref<32x16xbf16, #tpu.memory_space<vmem>>, %arg9: memref<1x16xf32, #tpu.memory_space<vmem>>, %arg10: memref<1x16xf32, #tpu.memory_space<vmem>>, %arg11: memref<1x1xf32, #tpu.memory_space<vmem>>, %arg12: memref<256x32xf32, #tpu.memory_space<vmem>>, %arg13: memref<256x128xf32, #tpu.memory_space<vmem>>) attributes {dimension_semantics = [#tpu.dimension_semantics<parallel>], iteration_bounds = array<i64: 1>, scalar_prefetch = 0 : i64, scratch_operands = 0 : i64, tpu.core_type = #tpu.core_type<tc>, window_params = [{transform_indices = @transform_0, window_bounds = array<i64: 256, 32>}, {pipeline_mode = #tpu.pipeline_mode<synchronous>, transform_indices = @transform_1, window_bounds = array<i64: 32, 64>}, {pipeline_mode = #tpu.pipeline_mode<synchronous>, transform_indices = @transform_2, window_bounds = array<i64: 1, 64>}, {pipeline_mode = #tpu.pipeline_mode<synchronous>, transform_indices = @transform_3, window_bounds = array<i64: 64, 32>}, {pipeline_mode = #tpu.pipeline_mode<synchronous>, transform_indices = @transform_4, window_bounds = array<i64: 1, 32>}, {pipeline_mode = #tpu.pipeline_mode<synchronous>, transform_indices = @transform_5, window_bounds = array<i64: 1, 32>}, {pipeline_mode = #tpu.pipeline_mode<synchronous>, transform_indices = @transform_6, window_bounds = array<i64: 1, 32>}, {pipeline_mode = #tpu.pipeline_mode<synchronous>, transform_indices = @transform_7, window_bounds = array<i64: 32, 16>}, {pipeline_mode = #tpu.pipeline_mode<synchronous>, transform_indices = @transform_8, window_bounds = array<i64: 1, 16>}, {pipeline_mode = #tpu.pipeline_mode<synchronous>, transform_indices = @transform_9, window_bounds = array<i64: 1, 16>}, {pipeline_mode = #tpu.pipeline_mode<synchronous>, transform_indices = @transform_10, window_bounds = array<i64: 1, 1>}, {transform_indices = @transform_11, window_bounds = array<i64: 256, 32>}, {transform_indices = @transform_12, window_bounds = array<i64: 256, 128>}]} {
    %c0 = arith.constant 0 : index
    %c0_0 = arith.constant 0 : index
    %0 = vector.load %arg1[%c0, %c0_0] : memref<256x32xbf16, #tpu.memory_space<vmem>>, vector<256x32xbf16>
    %c0_1 = arith.constant 0 : index
    %c0_2 = arith.constant 0 : index
    %1 = vector.load %arg2[%c0_1, %c0_2] : memref<32x64xbf16, #tpu.memory_space<vmem>>, vector<32x64xbf16>
    %cst = arith.constant dense<0.000000e+00> : vector<256x64xf32>
    %2 = tpu.matmul %0, %1, %cst {dimension_numbers = #tpu.dot_dimension_numbers<[1], [0], [0], [1], [0, 0, 1, 1], [], []>} : vector<256x32xbf16>, vector<32x64xbf16>, vector<256x64xf32> -> vector<256x64xf32>
    %c0_3 = arith.constant 0 : index
    %c0_4 = arith.constant 0 : index
    %3 = vector.load %arg3[%c0_3, %c0_4] : memref<1x64xf32, #tpu.memory_space<vmem>>, vector<1x64xf32>
    %4 = vector.broadcast %3 : vector<1x64xf32> to vector<256x64xf32>
    %5 = arith.addf %2, %4 : vector<256x64xf32>
    %cst_5 = arith.constant 0.000000e+00 : f32
    %6 = vector.broadcast %cst_5 : f32 to vector<256x64xf32>
    %7 = arith.maximumf %5, %6 : vector<256x64xf32>
    %8 = arith.truncf %7 : vector<256x64xf32> to vector<256x64xbf16>
    %c0_6 = arith.constant 0 : index
    %c0_7 = arith.constant 0 : index
    %9 = vector.load %arg4[%c0_6, %c0_7] : memref<64x32xbf16, #tpu.memory_space<vmem>>, vector<64x32xbf16>
    %cst_8 = arith.constant dense<0.000000e+00> : vector<256x32xf32>
    %10 = tpu.matmul %8, %9, %cst_8 {dimension_numbers = #tpu.dot_dimension_numbers<[1], [0], [0], [1], [0, 0, 1, 1], [], []>} : vector<256x64xbf16>, vector<64x32xbf16>, vector<256x32xf32> -> vector<256x32xf32>
    %c0_9 = arith.constant 0 : index
    %c0_10 = arith.constant 0 : index
    %11 = vector.load %arg5[%c0_9, %c0_10] : memref<1x32xf32, #tpu.memory_space<vmem>>, vector<1x32xf32>
    %12 = vector.broadcast %11 : vector<1x32xf32> to vector<256x32xf32>
    %13 = arith.addf %10, %12 : vector<256x32xf32>
    %cst_11 = arith.constant dense<0.000000e+00> : vector<256xf32>
    %14 = vector.multi_reduction <add>, %13, %cst_11 [1] : vector<256x32xf32> to vector<256xf32>
    %15 = vector.shape_cast %14 : vector<256xf32> to vector<256x1xf32>
    %cst_12 = arith.constant 3.200000e+01 : f32
    %16 = vector.broadcast %cst_12 : f32 to vector<256x1xf32>
    %17 = arith.divf %15, %16 : vector<256x1xf32>
    %18 = vector.broadcast %17 : vector<256x1xf32> to vector<256x32xf32>
    %19 = arith.subf %13, %18 : vector<256x32xf32>
    %20 = arith.mulf %19, %19 : vector<256x32xf32>
    %cst_13 = arith.constant dense<0.000000e+00> : vector<256xf32>
    %21 = vector.multi_reduction <add>, %20, %cst_13 [1] : vector<256x32xf32> to vector<256xf32>
    %22 = vector.shape_cast %21 : vector<256xf32> to vector<256x1xf32>
    %cst_14 = arith.constant 3.200000e+01 : f32
    %23 = vector.broadcast %cst_14 : f32 to vector<256x1xf32>
    %24 = arith.divf %22, %23 : vector<256x1xf32>
    %cst_15 = arith.constant 9.99999974E-6 : f32
    %25 = vector.broadcast %cst_15 : f32 to vector<256x1xf32>
    %26 = arith.addf %24, %25 : vector<256x1xf32>
    %27 = math.rsqrt %26 : vector<256x1xf32>
    %28 = vector.broadcast %27 : vector<256x1xf32> to vector<256x32xf32>
    %29 = arith.mulf %19, %28 : vector<256x32xf32>
    %c0_16 = arith.constant 0 : index
    %c0_17 = arith.constant 0 : index
    %30 = vector.load %arg6[%c0_16, %c0_17] : memref<1x32xf32, #tpu.memory_space<vmem>>, vector<1x32xf32>
    %31 = vector.broadcast %30 : vector<1x32xf32> to vector<256x32xf32>
    %32 = arith.mulf %29, %31 : vector<256x32xf32>
    %c0_18 = arith.constant 0 : index
    %c0_19 = arith.constant 0 : index
    %33 = vector.load %arg7[%c0_18, %c0_19] : memref<1x32xf32, #tpu.memory_space<vmem>>, vector<1x32xf32>
    %34 = vector.broadcast %33 : vector<1x32xf32> to vector<256x32xf32>
    %35 = arith.addf %32, %34 : vector<256x32xf32>
    %c0_20 = arith.constant 0 : index
    %c0_21 = arith.constant 0 : index
    %36 = vector.load %arg12[%c0_20, %c0_21] : memref<256x32xf32, #tpu.memory_space<vmem>>, vector<256x32xf32>
    tpu.vector_store %arg12[%c0_20, %c0_21], %35 {strides = array<i32>} : memref<256x32xf32, #tpu.memory_space<vmem>>, vector<256x32xf32>,
    %37 = arith.truncf %35 : vector<256x32xf32> to vector<256x32xbf16>
    %c0_22 = arith.constant 0 : index
    %c0_23 = arith.constant 0 : index
    %38 = vector.load %arg8[%c0_22, %c0_23] : memref<32x16xbf16, #tpu.memory_space<vmem>>, vector<32x16xbf16>
    %cst_24 = arith.constant dense<0.000000e+00> : vector<256x16xf32>
    %39 = tpu.matmul %37, %38, %cst_24 {dimension_numbers = #tpu.dot_dimension_numbers<[1], [0], [0], [1], [0, 0, 1, 1], [], []>} : vector<256x32xbf16>, vector<32x16xbf16>, vector<256x16xf32> -> vector<256x16xf32>
    %c0_25 = arith.constant 0 : index
    %c0_26 = arith.constant 0 : index
    %40 = vector.load %arg9[%c0_25, %c0_26] : memref<1x16xf32, #tpu.memory_space<vmem>>, vector<1x16xf32>
    %41 = vector.broadcast %40 : vector<1x16xf32> to vector<256x16xf32>
    %42 = arith.addf %39, %41 : vector<256x16xf32>
    %cst_27 = arith.constant 0.000000e+00 : f32
    %43 = vector.broadcast %cst_27 : f32 to vector<256x16xf32>
    %44 = arith.maximumf %42, %43 : vector<256x16xf32>
    %c0_28 = arith.constant 0 : index
    %c0_29 = arith.constant 0 : index
    %45 = vector.load %arg10[%c0_28, %c0_29] : memref<1x16xf32, #tpu.memory_space<vmem>>, vector<1x16xf32>
    %46 = vector.broadcast %45 : vector<1x16xf32> to vector<256x16xf32>
    %47 = arith.mulf %44, %46 : vector<256x16xf32>
    %cst_30 = arith.constant dense<0.000000e+00> : vector<256xf32>
    %48 = vector.multi_reduction <add>, %47, %cst_30 [1] : vector<256x16xf32> to vector<256xf32>
    %49 = vector.shape_cast %48 : vector<256xf32> to vector<256x1xf32>
    %c0_31 = arith.constant 0 : index
    %c0_32 = arith.constant 0 : index
    %50 = vector.load %arg11[%c0_31, %c0_32] : memref<1x1xf32, #tpu.memory_space<vmem>>, vector<1x1xf32>
    %51 = vector.broadcast %50 : vector<1x1xf32> to vector<256x1xf32>
    %52 = arith.addf %49, %51 : vector<256x1xf32>
    %53 = arith.negf %52 : vector<256x1xf32>
    %54 = math.exp %53 : vector<256x1xf32>
    %cst_33 = arith.constant 1.000000e+00 : f32
    %55 = vector.broadcast %cst_33 : f32 to vector<256x1xf32>
    %56 = arith.addf %55, %54 : vector<256x1xf32>
    %57 = arith.divf %55, %56 : vector<256x1xf32>
    %58 = vector.shape_cast %57 : vector<256x1xf32> to vector<256x1xf32>
    %59 = vector.broadcast %58 : vector<256x1xf32> to vector<256x128xf32>
    %c0_34 = arith.constant 0 : index
    %c0_35 = arith.constant 0 : index
    %60 = vector.load %arg13[%c0_34, %c0_35] : memref<256x128xf32, #tpu.memory_space<vmem>>, vector<256x128xf32>
    tpu.vector_store %arg13[%c0_34, %c0_35], %59 {strides = array<i32>} : memref<256x128xf32, #tpu.memory_space<vmem>>, vector<256x128xf32>,
    return
  }
  func.func @transform_0(%arg0: i32) -> (i32, i32) {
    %c0_i32 = arith.constant 0 : i32
    %c0_i32_0 = arith.constant 0 : i32
    return %arg0, %c0_i32 : i32, i32
  }
  func.func @transform_1(%arg0: i32) -> (i32, i32) {
    %c0_i32 = arith.constant 0 : i32
    %c0_i32_0 = arith.constant 0 : i32
    %c0_i32_1 = arith.constant 0 : i32
    return %c0_i32, %c0_i32_0 : i32, i32
  }
  func.func @transform_2(%arg0: i32) -> (i32, i32) {
    %c0_i32 = arith.constant 0 : i32
    %c0_i32_0 = arith.constant 0 : i32
    %c0_i32_1 = arith.constant 0 : i32
    return %c0_i32, %c0_i32_0 : i32, i32
  }
  func.func @transform_3(%arg0: i32) -> (i32, i32) {
    %c0_i32 = arith.constant 0 : i32
    %c0_i32_0 = arith.constant 0 : i32
    %c0_i32_1 = arith.constant 0 : i32
    return %c0_i32, %c0_i32_0 : i32, i32
  }
  func.func @transform_4(%arg0: i32) -> (i32, i32) {
    %c0_i32 = arith.constant 0 : i32
    %c0_i32_0 = arith.constant 0 : i32
    %c0_i32_1 = arith.constant 0 : i32
    return %c0_i32, %c0_i32_0 : i32, i32
  }
  func.func @transform_5(%arg0: i32) -> (i32, i32) {
    %c0_i32 = arith.constant 0 : i32
    %c0_i32_0 = arith.constant 0 : i32
    %c0_i32_1 = arith.constant 0 : i32
    return %c0_i32, %c0_i32_0 : i32, i32
  }
  func.func @transform_6(%arg0: i32) -> (i32, i32) {
    %c0_i32 = arith.constant 0 : i32
    %c0_i32_0 = arith.constant 0 : i32
    %c0_i32_1 = arith.constant 0 : i32
    return %c0_i32, %c0_i32_0 : i32, i32
  }
  func.func @transform_7(%arg0: i32) -> (i32, i32) {
    %c0_i32 = arith.constant 0 : i32
    %c0_i32_0 = arith.constant 0 : i32
    %c0_i32_1 = arith.constant 0 : i32
    return %c0_i32, %c0_i32_0 : i32, i32
  }
  func.func @transform_8(%arg0: i32) -> (i32, i32) {
    %c0_i32 = arith.constant 0 : i32
    %c0_i32_0 = arith.constant 0 : i32
    %c0_i32_1 = arith.constant 0 : i32
    return %c0_i32, %c0_i32_0 : i32, i32
  }
  func.func @transform_9(%arg0: i32) -> (i32, i32) {
    %c0_i32 = arith.constant 0 : i32
    %c0_i32_0 = arith.constant 0 : i32
    %c0_i32_1 = arith.constant 0 : i32
    return %c0_i32, %c0_i32_0 : i32, i32
  }
  func.func @transform_10(%arg0: i32) -> (i32, i32) {
    %c0_i32 = arith.constant 0 : i32
    %c0_i32_0 = arith.constant 0 : i32
    %c0_i32_1 = arith.constant 0 : i32
    return %c0_i32, %c0_i32_0 : i32, i32
  }
  func.func @transform_11(%arg0: i32) -> (i32, i32) {
    %c0_i32 = arith.constant 0 : i32
    %c0_i32_0 = arith.constant 0 : i32
    return %arg0, %c0_i32 : i32, i32
  }
  func.func @transform_12(%arg0: i32) -> (i32, i32) {
    %c0_i32 = arith.constant 0 : i32
    %c0_i32_0 = arith.constant 0 : i32
    return %arg0, %c0_i32 : i32, i32
  }
}

</mosaic_0001>

<llo_original>
// kernel: information_integration.1
$region0: #{information_integration.1}
  #allocation0 [shape = 'u32[]', space=smem, size = 0x4, offset = 0x4, fixed_abs, tag = 'smem constant byte address 0x4 - core index']
  #allocation1 [shape = 'u32[144,128]{1,0:T(1,128)}', space=vmem, size = 0x12000, scoped, tag = 'internal scratch']
  #allocation2 [shape = 'f32[1,1]{1,0:T(1,128)S(1)}', space=vmem, size = 0x200, scoped, tag = 'scoped memory for information_integration.1']
  %s0 = inlined_call_operand.vmem [shape: bf16[256,32], index: 0, kind: input, shape index: {}]
  %s1 = inlined_call_operand.vmem [shape: bf16[32,64], index: 1, kind: input, shape index: {}]
  %s2 = inlined_call_operand.vmem [shape: f32[1,64], index: 2, kind: input, shape index: {}]
  %s3 = inlined_call_operand.vmem [shape: bf16[64,32], index: 3, kind: input, shape index: {}]
  %s4 = inlined_call_operand.vmem [shape: f32[1,32], index: 4, kind: input, shape index: {}]
  %s5 = inlined_call_operand.vmem [shape: f32[1,32], index: 5, kind: input, shape index: {}]
  %s6 = inlined_call_operand.vmem [shape: f32[1,32], index: 6, kind: input, shape index: {}]
  %s7 = inlined_call_operand.vmem [shape: bf16[32,16], index: 7, kind: input, shape index: {}]
  %s8 = inlined_call_operand.vmem [shape: f32[1,16], index: 8, kind: input, shape index: {}]
  %s9 = inlined_call_operand.vmem [shape: f32[1,16], index: 9, kind: input, shape index: {}]
  %s10 = inlined_call_operand.<no memory space> [shape: f32[1,1], index: 10, kind: input, shape index: {}]
  %s11 = inlined_call_operand.vmem [shape: f32[256,32], index: 11, kind: output, shape index: {0}]
  %s12 = inlined_call_operand.vmem [shape: f32[256,128], index: 12, kind: output, shape index: {1}]
  %13 = xla_tuple %s11, %s12
  %s14 = sld [smem:[#allocation0]]
  $region62: #{information_integration.1} parent=0
    _
  %s16 = ssub.s32 1, %s14
  %s17 = scalar_select 0, %s16, %s14
  %v18 = vstv %s10
  %19 = vst [vmem:[#allocation2] sm:$0x1] %v18
  // Predicated region
  $region2: #{information_integration.1} parent=0 // pred_check
    _
  $region3: #{information_integration.1} parent=0 // pred_check_branch
    %21 = sbr.rel (0) target = $region5
  $region4: #{information_integration.1} parent=0 // pred_region
    _
  $region5: #{information_integration.1} parent=0 // pred_fallthru
    _
  // Predicated region
  $region6: #{information_integration.1} parent=0 // pred_check
    _
  $region7: #{information_integration.1} parent=0 // pred_check_branch
    %23 = sbr.rel (0) target = $region9
  $region8: #{information_integration.1} parent=0 // pred_region
    _
  $region9: #{information_integration.1} parent=0 // pred_fallthru
    _
  // Predicated region
  $region10: #{information_integration.1} parent=0 // pred_check
    _
  $region11: #{information_integration.1} parent=0 // pred_check_branch
    %25 = sbr.rel (0) target = $region13
  $region12: #{information_integration.1} parent=0 // pred_region
    _
  $region13: #{information_integration.1} parent=0 // pred_fallthru
    _
  // Predicated region
  $region14: #{information_integration.1} parent=0 // pred_check
    _
  $region15: #{information_integration.1} parent=0 // pred_check_branch
    %27 = sbr.rel (0) target = $region17
  $region16: #{information_integration.1} parent=0 // pred_region
    _
  $region17: #{information_integration.1} parent=0 // pred_fallthru
    _
  // Predicated region
  $region18: #{information_integration.1} parent=0 // pred_check
    _
  $region19: #{information_integration.1} parent=0 // pred_check_branch
    %29 = sbr.rel (0) target = $region21
  $region20: #{information_integration.1} parent=0 // pred_region
    _
  $region21: #{information_integration.1} parent=0 // pred_fallthru
    _
  // Predicated region
  $region22: #{information_integration.1} parent=0 // pred_check
    _
  $region23: #{information_integration.1} parent=0 // pred_check_branch
    %31 = sbr.rel (0) target = $region25
  $region24: #{information_integration.1} parent=0 // pred_region
    _
  $region25: #{information_integration.1} parent=0 // pred_fallthru
    _
  // Predicated region
  $region26: #{information_integration.1} parent=0 // pred_check
    _
  $region27: #{information_integration.1} parent=0 // pred_check_branch
    %33 = sbr.rel (0) target = $region29
  $region28: #{information_integration.1} parent=0 // pred_region
    _
  $region29: #{information_integration.1} parent=0 // pred_fallthru
    _
  // Predicated region
  $region30: #{information_integration.1} parent=0 // pred_check
    _
  $region31: #{information_integration.1} parent=0 // pred_check_branch
    %35 = sbr.rel (0) target = $region33
  $region32: #{information_integration.1} parent=0 // pred_region
    _
  $region33: #{information_integration.1} parent=0 // pred_fallthru
    _
  // Predicated region
  $region34: #{information_integration.1} parent=0 // pred_check
    _
  $region35: #{information_integration.1} parent=0 // pred_check_branch
    %37 = sbr.rel (0) target = $region37
  $region36: #{information_integration.1} parent=0 // pred_region
    _
  $region37: #{information_integration.1} parent=0 // pred_fallthru
    _
  // Predicated region
  $region38: #{information_integration.1} parent=0 // pred_check
    _
  $region39: #{information_integration.1} parent=0 // pred_check_branch
    %39 = sbr.rel (0) target = $region41
  $region40: #{information_integration.1} parent=0 // pred_region
    _
  $region41: #{information_integration.1} parent=0 // pred_fallthru
    _
  // Predicated region
  $region42: #{information_integration.1} parent=0 // pred_check
    _
  $region43: #{information_integration.1} parent=0 // pred_check_branch
    %41 = sbr.rel (0) target = $region45
  $region44: #{information_integration.1} parent=0 // pred_region
    _
  $region45: #{information_integration.1} parent=0 // pred_fallthru
    _
  %v43 = vld [vmem:[%s0] sm:$0xf]
  %v44 = vld [vmem:[%s0 + $0x4] sm:$0xf]
  %v45 = vld [vmem:[%s0 + $0x8] sm:$0xf]
  %v46 = vld [vmem:[%s0 + $0xc] sm:$0xf]
  %v47 = vld [vmem:[%s0 + $0x10] sm:$0xf]
  %v48 = vld [vmem:[%s0 + $0x14] sm:$0xf]
  %v49 = vld [vmem:[%s0 + $0x18] sm:$0xf]
  %v50 = vld [vmem:[%s0 + $0x1c] sm:$0xf]
  %v51 = vld [vmem:[%s0 + $0x20] sm:$0xf]
  %v52 = vld [vmem:[%s0 + $0x24] sm:$0xf]
  %v53 = vld [vmem:[%s0 + $0x28] sm:$0xf]
  %v54 = vld [vmem:[%s0 + $0x2c] sm:$0xf]
  %v55 = vld [vmem:[%s0 + $0x30] sm:$0xf]
  %v56 = vld [vmem:[%s0 + $0x34] sm:$0xf]
  %v57 = vld [vmem:[%s0 + $0x38] sm:$0xf]
  %v58 = vld [vmem:[%s0 + $0x3c] sm:$0xf]
  %v59 = vld [vmem:[%s0 + $0x40] sm:$0xf]
  %v60 = vld [vmem:[%s0 + $0x44] sm:$0xf]
  %v61 = vld [vmem:[%s0 + $0x48] sm:$0xf]
  %v62 = vld [vmem:[%s0 + $0x4c] sm:$0xf]
  %v63 = vld [vmem:[%s0 + $0x50] sm:$0xf]
  %v64 = vld [vmem:[%s0 + $0x54] sm:$0xf]
  %v65 = vld [vmem:[%s0 + $0x58] sm:$0xf]
  %v66 = vld [vmem:[%s0 + $0x5c] sm:$0xf]
  %v67 = vld [vmem:[%s0 + $0x60] sm:$0xf]
  %v68 = vld [vmem:[%s0 + $0x64] sm:$0xf]
  %v69 = vld [vmem:[%s0 + $0x68] sm:$0xf]
  %v70 = vld [vmem:[%s0 + $0x6c] sm:$0xf]
  %v71 = vld [vmem:[%s0 + $0x70] sm:$0xf]
  %v72 = vld [vmem:[%s0 + $0x74] sm:$0xf]
  %v73 = vld [vmem:[%s0 + $0x78] sm:$0xf]
  %v74 = vld [vmem:[%s0 + $0x7c] sm:$0xf]
  %v75 = vld [vmem:[%s1] sm:$0xf]
  %v76 = vld [vmem:[%s1 + $0x4] sm:$0xf]
  %v77 = vld [vmem:[%s1 + $0x8] sm:$0xf]
  %v78 = vld [vmem:[%s1 + $0xc] sm:$0xf]
  %v79 = vld [vmem:[%s2] sm:$0x1]
  %v81 = vlaneseq
  %v82 = vshrl.u32 %v81, 7
  %v83 = vsub.s32 0, %v82
  %v84 = vrot.slane %v79, %v83
  %v118 = vunpack.c.l.b16 %v43
  %v119 = vunpack.c.l.b16 %v44
  %v120 = vunpack.c.l.b16 %v45
  %v121 = vunpack.c.l.b16 %v46
  %v122 = vunpack.c.l.b16 %v47
  %v123 = vunpack.c.l.b16 %v48
  %v124 = vunpack.c.l.b16 %v49
  %v125 = vunpack.c.l.b16 %v50
  %v126 = vunpack.c.l.b16 %v51
  %v127 = vunpack.c.l.b16 %v52
  %v128 = vunpack.c.l.b16 %v53
  %v129 = vunpack.c.l.b16 %v54
  %v130 = vunpack.c.l.b16 %v55
  %v131 = vunpack.c.l.b16 %v56
  %v132 = vunpack.c.l.b16 %v57
  %v133 = vunpack.c.l.b16 %v58
  %v134 = vunpack.c.l.b16 %v59
  %v135 = vunpack.c.l.b16 %v60
  %v136 = vunpack.c.l.b16 %v61
  %v137 = vunpack.c.l.b16 %v62
  %v138 = vunpack.c.l.b16 %v63
  %v139 = vunpack.c.l.b16 %v64
  %v140 = vunpack.c.l.b16 %v65
  %v141 = vunpack.c.l.b16 %v66
  %v142 = vunpack.c.l.b16 %v67
  %v143 = vunpack.c.l.b16 %v68
  %v144 = vunpack.c.l.b16 %v69
  %v145 = vunpack.c.l.b16 %v70
  %v146 = vunpack.c.l.b16 %v71
  %v147 = vunpack.c.l.b16 %v72
  %v148 = vunpack.c.l.b16 %v73
  %v149 = vunpack.c.l.b16 %v74
  %v150 = vpack.c.b16 %v119, %v118
  %v151 = vpack.c.b16 %v121, %v120
  %v152 = vpack.c.b16 %v123, %v122
  %v153 = vpack.c.b16 %v125, %v124
  %v154 = vpack.c.b16 %v127, %v126
  %v155 = vpack.c.b16 %v129, %v128
  %v156 = vpack.c.b16 %v131, %v130
  %v157 = vpack.c.b16 %v133, %v132
  %v158 = vpack.c.b16 %v135, %v134
  %v159 = vpack.c.b16 %v137, %v136
  %v160 = vpack.c.b16 %v139, %v138
  %v161 = vpack.c.b16 %v141, %v140
  %v162 = vpack.c.b16 %v143, %v142
  %v163 = vpack.c.b16 %v145, %v144
  %v164 = vpack.c.b16 %v147, %v146
  %v165 = vpack.c.b16 %v149, %v148
  %v170 = vunpack.c.l.b16 %v75
  %v171 = vunpack.c.l.b16 %v76
  %v172 = vunpack.c.l.b16 %v77
  %v173 = vunpack.c.l.b16 %v78
  %v174 = vpack.c.b16 %v171, %v170
  %v175 = vpack.c.b16 %v173, %v172
  %vm178 = vcmask 261120
  %v180 = vsel %vm178, %v150, 0
  %v183 = vsel %vm178, %v151, 0
  %v186 = vsel %vm178, %v152, 0
  %v189 = vsel %vm178, %v153, 0
  %v192 = vsel %vm178, %v154, 0
  %v195 = vsel %vm178, %v155, 0
  %v198 = vsel %vm178, %v156, 0
  %v201 = vsel %vm178, %v157, 0
  %v204 = vsel %vm178, %v158, 0
  %v207 = vsel %vm178, %v159, 0
  %v210 = vsel %vm178, %v160, 0
  %v213 = vsel %vm178, %v161, 0
  %v216 = vsel %vm178, %v162, 0
  %v219 = vsel %vm178, %v163, 0
  %v222 = vsel %vm178, %v164, 0
  %v225 = vsel %vm178, %v165, 0
  %227 = vmatprep.subr.bf16.mxu0 0
  %228 = vmatpush1.bf16.msra.mxu0 0
  %229 = vmatprep.subr.bf16.mxu0 0
  %230 = vmatpush1.bf16.msra.mxu0 0
  %231 = vmatprep.subr.bf16.mxu0 0
  %232 = vmatpush1.bf16.msra.mxu0 0
  %233 = vmatprep.subr.bf16.mxu0 0
  %234 = vmatpush1.bf16.msra.mxu0 0
  %235 = vmatprep.subr.bf16.mxu0 0
  %236 = vmatpush1.bf16.msra.mxu0 0
  %237 = vmatprep.subr.bf16.mxu0 0
  %238 = vmatpush1.bf16.msra.mxu0 0
  %239 = vmatprep.subr.bf16.mxu0 0
  %240 = vmatpush1.bf16.msra.mxu0 %v175
  %241 = vmatprep.subr.bf16.mxu0 0
  %242 = vmatpush1.bf16.msra.mxu0 %v174
  %243 = vmatprep.subr.bf16.mxu0 0
  %244 = vmatpush2.bf16.msra.mxu0 0
  %245 = vmatprep.subr.bf16.mxu0 0
  %246 = vmatpush2.bf16.msra.mxu0 0
  %247 = vmatprep.subr.bf16.mxu0 0
  %248 = vmatpush2.bf16.msra.mxu0 0
  %249 = vmatprep.subr.bf16.mxu0 0
  %250 = vmatpush2.bf16.msra.mxu0 0
  %251 = vmatprep.subr.bf16.mxu0 0
  %252 = vmatpush2.bf16.msra.mxu0 0
  %253 = vmatprep.subr.bf16.mxu0 0
  %254 = vmatpush2.bf16.msra.mxu0 0
  %255 = vmatprep.subr.bf16.mxu0 0
  %256 = vmatpush2.bf16.msra.mxu0 0
  %257 = vmatprep.subr.bf16.mxu0 0
  %258 = vmatpush2.bf16.msra.mxu0 0
  %259 = vmatprep.mubr.bf16.mxu0 0
  %260 = vmatmul.mubr.bf16.gmra.mxu0 %v180
  %v261 = vpop.f32.mrf.mxu0
  %v262 = vadd.f32 %v84, %v261
  %v263 = vpop.f32.mrf.mxu0
  %v264 = vpop.f32.mrf.mxu0
  %v265 = vadd.f32 %v84, %v264
  %v266 = vpop.f32.mrf.mxu0
  %267 = vmatprep.mubr.bf16.mxu0 0
  %268 = vmatmul.mubr.bf16.gmra.mxu0 %v183
  %v269 = vpop.f32.mrf.mxu0
  %v270 = vadd.f32 %v84, %v269
  %v271 = vpop.f32.mrf.mxu0
  %v272 = vpop.f32.mrf.mxu0
  %v273 = vadd.f32 %v84, %v272
  %v274 = vpop.f32.mrf.mxu0
  %275 = vmatprep.mubr.bf16.mxu0 0
  %276 = vmatmul.mubr.bf16.gmra.mxu0 %v186
  %v277 = vpop.f32.mrf.mxu0
  %v278 = vadd.f32 %v84, %v277
  %v279 = vpop.f32.mrf.mxu0
  %v280 = vpop.f32.mrf.mxu0
  %v281 = vadd.f32 %v84, %v280
  %v282 = vpop.f32.mrf.mxu0
  %283 = vmatprep.mubr.bf16.mxu0 0
  %284 = vmatmul.mubr.bf16.gmra.mxu0 %v189
  %v285 = vpop.f32.mrf.mxu0
  %v286 = vadd.f32 %v84, %v285
  %v287 = vpop.f32.mrf.mxu0
  %v288 = vpop.f32.mrf.mxu0
  %v289 = vadd.f32 %v84, %v288
  %v290 = vpop.f32.mrf.mxu0
  %291 = vmatprep.mubr.bf16.mxu0 0
  %292 = vmatmul.mubr.bf16.gmra.mxu0 %v192
  %v293 = vpop.f32.mrf.mxu0
  %v294 = vadd.f32 %v84, %v293
  %v295 = vpop.f32.mrf.mxu0
  %v296 = vpop.f32.mrf.mxu0
  %v297 = vadd.f32 %v84, %v296
  %v298 = vpop.f32.mrf.mxu0
  %299 = vmatprep.mubr.bf16.mxu0 0
  %300 = vmatmul.mubr.bf16.gmra.mxu0 %v195
  %v301 = vpop.f32.mrf.mxu0
  %v302 = vadd.f32 %v84, %v301
  %v303 = vpop.f32.mrf.mxu0
  %v304 = vpop.f32.mrf.mxu0
  %v305 = vadd.f32 %v84, %v304
  %v306 = vpop.f32.mrf.mxu0
  %307 = vmatprep.mubr.bf16.mxu0 0
  %308 = vmatmul.mubr.bf16.gmra.mxu0 %v198
  %v309 = vpop.f32.mrf.mxu0
  %v310 = vadd.f32 %v84, %v309
  %v311 = vpop.f32.mrf.mxu0
  %v312 = vpop.f32.mrf.mxu0
  %v313 = vadd.f32 %v84, %v312
  %v314 = vpop.f32.mrf.mxu0
  %315 = vmatprep.mubr.bf16.mxu0 0
  %316 = vmatmul.mubr.bf16.gmra.mxu0 %v201
  %v317 = vpop.f32.mrf.mxu0
  %v318 = vadd.f32 %v84, %v317
  %v319 = vpop.f32.mrf.mxu0
  %v320 = vpop.f32.mrf.mxu0
  %v321 = vadd.f32 %v84, %v320
  %v322 = vpop.f32.mrf.mxu0
  %323 = vmatprep.mubr.bf16.mxu0 0
  %324 = vmatmul.mubr.bf16.gmra.mxu0 %v204
  %v325 = vpop.f32.mrf.mxu0
  %v326 = vadd.f32 %v84, %v325
  %v327 = vpop.f32.mrf.mxu0
  %v328 = vpop.f32.mrf.mxu0
  %v329 = vadd.f32 %v84, %v328
  %v330 = vpop.f32.mrf.mxu0
  %331 = vmatprep.mubr.bf16.mxu0 0
  %332 = vmatmul.mubr.bf16.gmra.mxu0 %v207
  %v333 = vpop.f32.mrf.mxu0
  %v334 = vadd.f32 %v84, %v333
  %v335 = vpop.f32.mrf.mxu0
  %v336 = vpop.f32.mrf.mxu0
  %v337 = vadd.f32 %v84, %v336
  %v338 = vpop.f32.mrf.mxu0
  %339 = vmatprep.mubr.bf16.mxu0 0
  %340 = vmatmul.mubr.bf16.gmra.mxu0 %v210
  %v341 = vpop.f32.mrf.mxu0
  %v342 = vadd.f32 %v84, %v341
  %v343 = vpop.f32.mrf.mxu0
  %v344 = vpop.f32.mrf.mxu0
  %v345 = vadd.f32 %v84, %v344
  %v346 = vpop.f32.mrf.mxu0
  %347 = vmatprep.mubr.bf16.mxu0 0
  %348 = vmatmul.mubr.bf16.gmra.mxu0 %v213
  %v349 = vpop.f32.mrf.mxu0
  %v350 = vadd.f32 %v84, %v349
  %v351 = vpop.f32.mrf.mxu0
  %v352 = vpop.f32.mrf.mxu0
  %v353 = vadd.f32 %v84, %v352
  %v354 = vpop.f32.mrf.mxu0
  %355 = vmatprep.mubr.bf16.mxu0 0
  %356 = vmatmul.mubr.bf16.gmra.mxu0 %v216
  %v357 = vpop.f32.mrf.mxu0
  %v358 = vadd.f32 %v84, %v357
  %v359 = vpop.f32.mrf.mxu0
  %v360 = vpop.f32.mrf.mxu0
  %v361 = vadd.f32 %v84, %v360
  %v362 = vpop.f32.mrf.mxu0
  %363 = vmatprep.mubr.bf16.mxu0 0
  %364 = vmatmul.mubr.bf16.gmra.mxu0 %v219
  %v365 = vpop.f32.mrf.mxu0
  %v366 = vadd.f32 %v84, %v365
  %v367 = vpop.f32.mrf.mxu0
  %v368 = vpop.f32.mrf.mxu0
  %v369 = vadd.f32 %v84, %v368
  %v370 = vpop.f32.mrf.mxu0
  %371 = vmatprep.mubr.bf16.mxu0 0
  %372 = vmatmul.mubr.bf16.gmra.mxu0 %v222
  %v373 = vpop.f32.mrf.mxu0
  %v374 = vadd.f32 %v84, %v373
  %v375 = vpop.f32.mrf.mxu0
  %v376 = vpop.f32.mrf.mxu0
  %v377 = vadd.f32 %v84, %v376
  %v378 = vpop.f32.mrf.mxu0
  %379 = vmatprep.mubr.bf16.mxu0 0
  %380 = vmatmul.mubr.bf16.gmra.mxu0 %v225
  %v381 = vpop.f32.mrf.mxu0
  %v382 = vadd.f32 %v84, %v381
  %v383 = vpop.f32.mrf.mxu0
  %v384 = vpop.f32.mrf.mxu0
  %v385 = vadd.f32 %v84, %v384
  %v386 = vpop.f32.mrf.mxu0
  %387 = vdwg.mxu0
  %v388 = vmax.f32 %v262, 0.0
  %v389 = vmax.f32 %v265, 0.0
  %v390 = vmax.f32 %v270, 0.0
  %v391 = vmax.f32 %v273, 0.0
  %v392 = vmax.f32 %v278, 0.0
  %v393 = vmax.f32 %v281, 0.0
  %v394 = vmax.f32 %v286, 0.0
  %v395 = vmax.f32 %v289, 0.0
  %v396 = vmax.f32 %v294, 0.0
  %v397 = vmax.f32 %v297, 0.0
  %v398 = vmax.f32 %v302, 0.0
  %v399 = vmax.f32 %v305, 0.0
  %v400 = vmax.f32 %v310, 0.0
  %v401 = vmax.f32 %v313, 0.0
  %v402 = vmax.f32 %v318, 0.0
  %v403 = vmax.f32 %v321, 0.0
  %v404 = vmax.f32 %v326, 0.0
  %v405 = vmax.f32 %v329, 0.0
  %v406 = vmax.f32 %v334, 0.0
  %v407 = vmax.f32 %v337, 0.0
  %v408 = vmax.f32 %v342, 0.0
  %v409 = vmax.f32 %v345, 0.0
  %v410 = vmax.f32 %v350, 0.0
  %v411 = vmax.f32 %v353, 0.0
  %v412 = vmax.f32 %v358, 0.0
  %v413 = vmax.f32 %v361, 0.0
  %v414 = vmax.f32 %v366, 0.0
  %v415 = vmax.f32 %v369, 0.0
  %v416 = vmax.f32 %v374, 0.0
  %v417 = vmax.f32 %v377, 0.0
  %v418 = vmax.f32 %v382, 0.0
  %v419 = vmax.f32 %v385, 0.0
  %v420 = vpack.c.bf16 %v389, %v388
  %v421 = vpack.c.bf16 %v391, %v390
  %v422 = vpack.c.bf16 %v393, %v392
  %v423 = vpack.c.bf16 %v395, %v394
  %v424 = vpack.c.bf16 %v397, %v396
  %v425 = vpack.c.bf16 %v399, %v398
  %v426 = vpack.c.bf16 %v401, %v400
  %v427 = vpack.c.bf16 %v403, %v402
  %v428 = vpack.c.bf16 %v405, %v404
  %v429 = vpack.c.bf16 %v407, %v406
  %v430 = vpack.c.bf16 %v409, %v408
  %v431 = vpack.c.bf16 %v411, %v410
  %v432 = vpack.c.bf16 %v413, %v412
  %v433 = vpack.c.bf16 %v415, %v414
  %v434 = vpack.c.bf16 %v417, %v416
  %v435 = vpack.c.bf16 %v419, %v418
  %v436 = vld [vmem:[%s3] sm:$0xf]
  %v437 = vld [vmem:[%s3 + $0x4] sm:$0xf]
  %v438 = vld [vmem:[%s3 + $0x8] sm:$0xf]
  %v439 = vld [vmem:[%s3 + $0xc] sm:$0xf]
  %v440 = vld [vmem:[%s3 + $0x10] sm:$0xf]
  %v441 = vld [vmem:[%s3 + $0x14] sm:$0xf]
  %v442 = vld [vmem:[%s3 + $0x18] sm:$0xf]
  %v443 = vld [vmem:[%s3 + $0x1c] sm:$0xf]
  %v444 = vld [vmem:[%s4] sm:$0x1]
  %v446 = vlaneseq
  %v447 = vshrl.u32 %v446, 7
  %v448 = vsub.s32 0, %v447
  %v449 = vrot.slane %v444, %v448
  %v459 = vunpack.c.l.b16 %v436
  %v460 = vunpack.c.l.b16 %v437
  %v461 = vunpack.c.l.b16 %v438
  %v462 = vunpack.c.l.b16 %v439
  %v463 = vunpack.c.l.b16 %v440
  %v464 = vunpack.c.l.b16 %v441
  %v465 = vunpack.c.l.b16 %v442
  %v466 = vunpack.c.l.b16 %v443
  %v467 = vpack.c.b16 %v460, %v459
  %v468 = vpack.c.b16 %v462, %v461
  %v469 = vpack.c.b16 %v464, %v463
  %v470 = vpack.c.b16 %v466, %v465
  %vm475 = vcmask 523264
  %v477 = vsel %vm475, %v420, 0
  %v480 = vsel %vm475, %v421, 0
  %v483 = vsel %vm475, %v422, 0
  %v486 = vsel %vm475, %v423, 0
  %v489 = vsel %vm475, %v424, 0
  %v492 = vsel %vm475, %v425, 0
  %v495 = vsel %vm475, %v426, 0
  %v498 = vsel %vm475, %v427, 0
  %v501 = vsel %vm475, %v428, 0
  %v504 = vsel %vm475, %v429, 0
  %v507 = vsel %vm475, %v430, 0
  %v510 = vsel %vm475, %v431, 0
  %v513 = vsel %vm475, %v432, 0
  %v516 = vsel %vm475, %v433, 0
  %v519 = vsel %vm475, %v434, 0
  %v522 = vsel %vm475, %v435, 0
  %524 = vmatprep.subr.bf16.mxu0 0
  %525 = vmatpush1.bf16.msra.mxu0 0
  %526 = vmatprep.subr.bf16.mxu0 0
  %527 = vmatpush1.bf16.msra.mxu0 0
  %528 = vmatprep.subr.bf16.mxu0 0
  %529 = vmatpush1.bf16.msra.mxu0 0
  %530 = vmatprep.subr.bf16.mxu0 0
  %531 = vmatpush1.bf16.msra.mxu0 0
  %532 = vmatprep.subr.bf16.mxu0 0
  %533 = vmatpush1.bf16.msra.mxu0 %v470
  %534 = vmatprep.subr.bf16.mxu0 0
  %535 = vmatpush1.bf16.msra.mxu0 %v469
  %536 = vmatprep.subr.bf16.mxu0 0
  %537 = vmatpush1.bf16.msra.mxu0 %v468
  %538 = vmatprep.subr.bf16.mxu0 0
  %539 = vmatpush1.bf16.msra.mxu0 %v467
  %540 = vmatprep.subr.bf16.mxu0 0
  %541 = vmatpush2.bf16.msra.mxu0 0
  %542 = vmatprep.subr.bf16.mxu0 0
  %543 = vmatpush2.bf16.msra.mxu0 0
  %544 = vmatprep.subr.bf16.mxu0 0
  %545 = vmatpush2.bf16.msra.mxu0 0
  %546 = vmatprep.subr.bf16.mxu0 0
  %547 = vmatpush2.bf16.msra.mxu0 0
  %548 = vmatprep.subr.bf16.mxu0 0
  %549 = vmatpush2.bf16.msra.mxu0 0
  %550 = vmatprep.subr.bf16.mxu0 0
  %551 = vmatpush2.bf16.msra.mxu0 0
  %552 = vmatprep.subr.bf16.mxu0 0
  %553 = vmatpush2.bf16.msra.mxu0 0
  %554 = vmatprep.subr.bf16.mxu0 0
  %555 = vmatpush2.bf16.msra.mxu0 0
  %556 = vmatprep.mubr.bf16.mxu0 0
  %557 = vmatmul.mubr.bf16.gmra.mxu0 %v477
  %v558 = vpop.f32.mrf.mxu0
  %v559 = vadd.f32 %v449, %v558
  %v560 = vpop.f32.mrf.mxu0
  %v561 = vpop.f32.mrf.mxu0
  %v562 = vadd.f32 %v449, %v561
  %v563 = vpop.f32.mrf.mxu0
  %564 = vmatprep.mubr.bf16.mxu0 0
  %565 = vmatmul.mubr.bf16.gmra.mxu0 %v480
  %v566 = vpop.f32.mrf.mxu0
  %v567 = vadd.f32 %v449, %v566
  %v568 = vpop.f32.mrf.mxu0
  %v569 = vpop.f32.mrf.mxu0
  %v570 = vadd.f32 %v449, %v569
  %v571 = vpop.f32.mrf.mxu0
  %572 = vmatprep.mubr.bf16.mxu0 0
  %573 = vmatmul.mubr.bf16.gmra.mxu0 %v483
  %v574 = vpop.f32.mrf.mxu0
  %v575 = vadd.f32 %v449, %v574
  %v576 = vpop.f32.mrf.mxu0
  %v577 = vpop.f32.mrf.mxu0
  %v578 = vadd.f32 %v449, %v577
  %v579 = vpop.f32.mrf.mxu0
  %580 = vmatprep.mubr.bf16.mxu0 0
  %581 = vmatmul.mubr.bf16.gmra.mxu0 %v486
  %v582 = vpop.f32.mrf.mxu0
  %v583 = vadd.f32 %v449, %v582
  %v584 = vpop.f32.mrf.mxu0
  %v585 = vpop.f32.mrf.mxu0
  %v586 = vadd.f32 %v449, %v585
  %v587 = vpop.f32.mrf.mxu0
  %588 = vmatprep.mubr.bf16.mxu0 0
  %589 = vmatmul.mubr.bf16.gmra.mxu0 %v489
  %v590 = vpop.f32.mrf.mxu0
  %v591 = vadd.f32 %v449, %v590
  %v592 = vpop.f32.mrf.mxu0
  %v593 = vpop.f32.mrf.mxu0
  %v594 = vadd.f32 %v449, %v593
  %v595 = vpop.f32.mrf.mxu0
  %596 = vmatprep.mubr.bf16.mxu0 0
  %597 = vmatmul.mubr.bf16.gmra.mxu0 %v492
  %v598 = vpop.f32.mrf.mxu0
  %v599 = vadd.f32 %v449, %v598
  %v600 = vpop.f32.mrf.mxu0
  %v601 = vpop.f32.mrf.mxu0
  %v602 = vadd.f32 %v449, %v601
  %v603 = vpop.f32.mrf.mxu0
  %604 = vmatprep.mubr.bf16.mxu0 0
  %605 = vmatmul.mubr.bf16.gmra.mxu0 %v495
  %v606 = vpop.f32.mrf.mxu0
  %v607 = vadd.f32 %v449, %v606
  %v608 = vpop.f32.mrf.mxu0
  %v609 = vpop.f32.mrf.mxu0
  %v610 = vadd.f32 %v449, %v609
  %v611 = vpop.f32.mrf.mxu0
  %612 = vmatprep.mubr.bf16.mxu0 0
  %613 = vmatmul.mubr.bf16.gmra.mxu0 %v498
  %v614 = vpop.f32.mrf.mxu0
  %v615 = vadd.f32 %v449, %v614
  %v616 = vpop.f32.mrf.mxu0
  %v617 = vpop.f32.mrf.mxu0
  %v618 = vadd.f32 %v449, %v617
  %v619 = vpop.f32.mrf.mxu0
  %620 = vmatprep.mubr.bf16.mxu0 0
  %621 = vmatmul.mubr.bf16.gmra.mxu0 %v501
  %v622 = vpop.f32.mrf.mxu0
  %v623 = vadd.f32 %v449, %v622
  %v624 = vpop.f32.mrf.mxu0
  %v625 = vpop.f32.mrf.mxu0
  %v626 = vadd.f32 %v449, %v625
  %v627 = vpop.f32.mrf.mxu0
  %628 = vmatprep.mubr.bf16.mxu0 0
  %629 = vmatmul.mubr.bf16.gmra.mxu0 %v504
  %v630 = vpop.f32.mrf.mxu0
  %v631 = vadd.f32 %v449, %v630
  %v632 = vpop.f32.mrf.mxu0
  %v633 = vpop.f32.mrf.mxu0
  %v634 = vadd.f32 %v449, %v633
  %v635 = vpop.f32.mrf.mxu0
  %636 = vmatprep.mubr.bf16.mxu0 0
  %637 = vmatmul.mubr.bf16.gmra.mxu0 %v507
  %v638 = vpop.f32.mrf.mxu0
  %v639 = vadd.f32 %v449, %v638
  %v640 = vpop.f32.mrf.mxu0
  %v641 = vpop.f32.mrf.mxu0
  %v642 = vadd.f32 %v449, %v641
  %v643 = vpop.f32.mrf.mxu0
  %644 = vmatprep.mubr.bf16.mxu0 0
  %645 = vmatmul.mubr.bf16.gmra.mxu0 %v510
  %v646 = vpop.f32.mrf.mxu0
  %v647 = vadd.f32 %v449, %v646
  %v648 = vpop.f32.mrf.mxu0
  %v649 = vpop.f32.mrf.mxu0
  %v650 = vadd.f32 %v449, %v649
  %v651 = vpop.f32.mrf.mxu0
  %652 = vmatprep.mubr.bf16.mxu0 0
  %653 = vmatmul.mubr.bf16.gmra.mxu0 %v513
  %v654 = vpop.f32.mrf.mxu0
  %v655 = vadd.f32 %v449, %v654
  %v656 = vpop.f32.mrf.mxu0
  %v657 = vpop.f32.mrf.mxu0
  %v658 = vadd.f32 %v449, %v657
  %v659 = vpop.f32.mrf.mxu0
  %660 = vmatprep.mubr.bf16.mxu0 0
  %661 = vmatmul.mubr.bf16.gmra.mxu0 %v516
  %v662 = vpop.f32.mrf.mxu0
  %v663 = vadd.f32 %v449, %v662
  %v664 = vpop.f32.mrf.mxu0
  %v665 = vpop.f32.mrf.mxu0
  %v666 = vadd.f32 %v449, %v665
  %v667 = vpop.f32.mrf.mxu0
  %668 = vmatprep.mubr.bf16.mxu0 0
  %669 = vmatmul.mubr.bf16.gmra.mxu0 %v519
  %v670 = vpop.f32.mrf.mxu0
  %v671 = vadd.f32 %v449, %v670
  %v672 = vpop.f32.mrf.mxu0
  %v673 = vpop.f32.mrf.mxu0
  %v674 = vadd.f32 %v449, %v673
  %v675 = vpop.f32.mrf.mxu0
  %676 = vmatprep.mubr.bf16.mxu0 0
  %677 = vmatmul.mubr.bf16.gmra.mxu0 %v522
  %v678 = vpop.f32.mrf.mxu0
  %v679 = vadd.f32 %v449, %v678
  %v680 = vpop.f32.mrf.mxu0
  %v681 = vpop.f32.mrf.mxu0
  %v682 = vadd.f32 %v449, %v681
  %v683 = vpop.f32.mrf.mxu0
  %684 = vdwg.mxu0
  %v685 = vsel %vm178, %v559, 0.0
  %686 = vadd.xlane.f32.xlu0 %v685
  %v687 = vpop.xlane.xlu0 %686
  %v688 = vsel %vm178, %v562, 0.0
  %689 = vadd.xlane.f32.xlu0 %v688
  %v690 = vpop.xlane.xlu0 %689
  %v691 = vsel %vm178, %v567, 0.0
  %692 = vadd.xlane.f32.xlu0 %v691
  %v693 = vpop.xlane.xlu0 %692
  %v694 = vsel %vm178, %v570, 0.0
  %695 = vadd.xlane.f32.xlu0 %v694
  %v696 = vpop.xlane.xlu0 %695
  %v697 = vsel %vm178, %v575, 0.0
  %698 = vadd.xlane.f32.xlu0 %v697
  %v699 = vpop.xlane.xlu0 %698
  %v700 = vsel %vm178, %v578, 0.0
  %701 = vadd.xlane.f32.xlu0 %v700
  %v702 = vpop.xlane.xlu0 %701
  %v703 = vsel %vm178, %v583, 0.0
  %704 = vadd.xlane.f32.xlu0 %v703
  %v705 = vpop.xlane.xlu0 %704
  %v706 = vsel %vm178, %v586, 0.0
  %707 = vadd.xlane.f32.xlu0 %v706
  %v708 = vpop.xlane.xlu0 %707
  %v709 = vsel %vm178, %v591, 0.0
  %710 = vadd.xlane.f32.xlu0 %v709
  %v711 = vpop.xlane.xlu0 %710
  %v712 = vsel %vm178, %v594, 0.0
  %713 = vadd.xlane.f32.xlu0 %v712
  %v714 = vpop.xlane.xlu0 %713
  %v715 = vsel %vm178, %v599, 0.0
  %716 = vadd.xlane.f32.xlu0 %v715
  %v717 = vpop.xlane.xlu0 %716
  %v718 = vsel %vm178, %v602, 0.0
  %719 = vadd.xlane.f32.xlu0 %v718
  %v720 = vpop.xlane.xlu0 %719
  %v721 = vsel %vm178, %v607, 0.0
  %722 = vadd.xlane.f32.xlu0 %v721
  %v723 = vpop.xlane.xlu0 %722
  %v724 = vsel %vm178, %v610, 0.0
  %725 = vadd.xlane.f32.xlu0 %v724
  %v726 = vpop.xlane.xlu0 %725
  %v727 = vsel %vm178, %v615, 0.0
  %728 = vadd.xlane.f32.xlu0 %v727
  %v729 = vpop.xlane.xlu0 %728
  %v730 = vsel %vm178, %v618, 0.0
  %731 = vadd.xlane.f32.xlu0 %v730
  %v732 = vpop.xlane.xlu0 %731
  %v733 = vsel %vm178, %v623, 0.0
  %734 = vadd.xlane.f32.xlu0 %v733
  %v735 = vpop.xlane.xlu0 %734
  %v736 = vsel %vm178, %v626, 0.0
  %737 = vadd.xlane.f32.xlu0 %v736
  %v738 = vpop.xlane.xlu0 %737
  %v739 = vsel %vm178, %v631, 0.0
  %740 = vadd.xlane.f32.xlu0 %v739
  %v741 = vpop.xlane.xlu0 %740
  %v742 = vsel %vm178, %v634, 0.0
  %743 = vadd.xlane.f32.xlu0 %v742
  %v744 = vpop.xlane.xlu0 %743
  %v745 = vsel %vm178, %v639, 0.0
  %746 = vadd.xlane.f32.xlu0 %v745
  %v747 = vpop.xlane.xlu0 %746
  %v748 = vsel %vm178, %v642, 0.0
  %749 = vadd.xlane.f32.xlu0 %v748
  %v750 = vpop.xlane.xlu0 %749
  %v751 = vsel %vm178, %v647, 0.0
  %752 = vadd.xlane.f32.xlu0 %v751
  %v753 = vpop.xlane.xlu0 %752
  %v754 = vsel %vm178, %v650, 0.0
  %755 = vadd.xlane.f32.xlu0 %v754
  %v756 = vpop.xlane.xlu0 %755
  %v757 = vsel %vm178, %v655, 0.0
  %758 = vadd.xlane.f32.xlu0 %v757
  %v759 = vpop.xlane.xlu0 %758
  %v760 = vsel %vm178, %v658, 0.0
  %761 = vadd.xlane.f32.xlu0 %v760
  %v762 = vpop.xlane.xlu0 %761
  %v763 = vsel %vm178, %v663, 0.0
  %764 = vadd.xlane.f32.xlu0 %v763
  %v765 = vpop.xlane.xlu0 %764
  %v766 = vsel %vm178, %v666, 0.0
  %767 = vadd.xlane.f32.xlu0 %v766
  %v768 = vpop.xlane.xlu0 %767
  %v769 = vsel %vm178, %v671, 0.0
  %770 = vadd.xlane.f32.xlu0 %v769
  %v771 = vpop.xlane.xlu0 %770
  %v772 = vsel %vm178, %v674, 0.0
  %773 = vadd.xlane.f32.xlu0 %v772
  %v774 = vpop.xlane.xlu0 %773
  %v775 = vsel %vm178, %v679, 0.0
  %776 = vadd.xlane.f32.xlu0 %v775
  %v777 = vpop.xlane.xlu0 %776
  %v778 = vsel %vm178, %v682, 0.0
  %779 = vadd.xlane.f32.xlu0 %v778
  %v780 = vpop.xlane.xlu0 %779
  %v781 = vrcp.pop 32.0
  %v782 = vmul.f32 %v687, %v781
  %v783 = vmul.f32 %v690, %v781
  %v784 = vmul.f32 %v693, %v781
  %v785 = vmul.f32 %v696, %v781
  %v786 = vmul.f32 %v699, %v781
  %v787 = vmul.f32 %v702, %v781
  %v788 = vmul.f32 %v705, %v781
  %v789 = vmul.f32 %v708, %v781
  %v790 = vmul.f32 %v711, %v781
  %v791 = vmul.f32 %v714, %v781
  %v792 = vmul.f32 %v717, %v781
  %v793 = vmul.f32 %v720, %v781
  %v794 = vmul.f32 %v723, %v781
  %v795 = vmul.f32 %v726, %v781
  %v796 = vmul.f32 %v729, %v781
  %v797 = vmul.f32 %v732, %v781
  %v798 = vmul.f32 %v735, %v781
  %v799 = vmul.f32 %v738, %v781
  %v800 = vmul.f32 %v741, %v781
  %v801 = vmul.f32 %v744, %v781
  %v802 = vmul.f32 %v747, %v781
  %v803 = vmul.f32 %v750, %v781
  %v804 = vmul.f32 %v753, %v781
  %v805 = vmul.f32 %v756, %v781
  %v806 = vmul.f32 %v759, %v781
  %v807 = vmul.f32 %v762, %v781
  %v808 = vmul.f32 %v765, %v781
  %v809 = vmul.f32 %v768, %v781
  %v810 = vmul.f32 %v771, %v781
  %v811 = vmul.f32 %v774, %v781
  %v812 = vmul.f32 %v777, %v781
  %v813 = vmul.f32 %v780, %v781
  %v814 = vsub.f32 %v559, %v782
  %v815 = vsub.f32 %v562, %v783
  %v816 = vsub.f32 %v567, %v784
  %v817 = vsub.f32 %v570, %v785
  %v818 = vsub.f32 %v575, %v786
  %v819 = vsub.f32 %v578, %v787
  %v820 = vsub.f32 %v583, %v788
  %v821 = vsub.f32 %v586, %v789
  %v822 = vsub.f32 %v591, %v790
  %v823 = vsub.f32 %v594, %v791
  %v824 = vsub.f32 %v599, %v792
  %v825 = vsub.f32 %v602, %v793
  %v826 = vsub.f32 %v607, %v794
  %v827 = vsub.f32 %v610, %v795
  %v828 = vsub.f32 %v615, %v796
  %v829 = vsub.f32 %v618, %v797
  %v830 = vsub.f32 %v623, %v798
  %v831 = vsub.f32 %v626, %v799
  %v832 = vsub.f32 %v631, %v800
  %v833 = vsub.f32 %v634, %v801
  %v834 = vsub.f32 %v639, %v802
  %v835 = vsub.f32 %v642, %v803
  %v836 = vsub.f32 %v647, %v804
  %v837 = vsub.f32 %v650, %v805
  %v838 = vsub.f32 %v655, %v806
  %v839 = vsub.f32 %v658, %v807
  %v840 = vsub.f32 %v663, %v808
  %v841 = vsub.f32 %v666, %v809
  %v842 = vsub.f32 %v671, %v810
  %v843 = vsub.f32 %v674, %v811
  %v844 = vsub.f32 %v679, %v812
  %v845 = vsub.f32 %v682, %v813
  %v846 = vmul.f32 %v814, %v814
  %v847 = vmul.f32 %v815, %v815
  %v848 = vmul.f32 %v816, %v816
  %v849 = vmul.f32 %v817, %v817
  %v850 = vmul.f32 %v818, %v818
  %v851 = vmul.f32 %v819, %v819
  %v852 = vmul.f32 %v820, %v820
  %v853 = vmul.f32 %v821, %v821
  %v854 = vmul.f32 %v822, %v822
  %v855 = vmul.f32 %v823, %v823
  %v856 = vmul.f32 %v824, %v824
  %v857 = vmul.f32 %v825, %v825
  %v858 = vmul.f32 %v826, %v826
  %v859 = vmul.f32 %v827, %v827
  %v860 = vmul.f32 %v828, %v828
  %v861 = vmul.f32 %v829, %v829
  %v862 = vmul.f32 %v830, %v830
  %v863 = vmul.f32 %v831, %v831
  %v864 = vmul.f32 %v832, %v832
  %v865 = vmul.f32 %v833, %v833
  %v866 = vmul.f32 %v834, %v834
  %v867 = vmul.f32 %v835, %v835
  %v868 = vmul.f32 %v836, %v836
  %v869 = vmul.f32 %v837, %v837
  %v870 = vmul.f32 %v838, %v838
  %v871 = vmul.f32 %v839, %v839
  %v872 = vmul.f32 %v840, %v840
  %v873 = vmul.f32 %v841, %v841
  %v874 = vmul.f32 %v842, %v842
  %v875 = vmul.f32 %v843, %v843
  %v876 = vmul.f32 %v844, %v844
  %v877 = vmul.f32 %v845, %v845
  %v878 = vsel %vm178, %v846, 0.0
  %879 = vadd.xlane.f32.xlu0 %v878
  %v880 = vpop.xlane.xlu0 %879
  %v881 = vsel %vm178, %v847, 0.0
  %882 = vadd.xlane.f32.xlu0 %v881
  %v883 = vpop.xlane.xlu0 %882
  %v884 = vsel %vm178, %v848, 0.0
  %885 = vadd.xlane.f32.xlu0 %v884
  %v886 = vpop.xlane.xlu0 %885
  %v887 = vsel %vm178, %v849, 0.0
  %888 = vadd.xlane.f32.xlu0 %v887
  %v889 = vpop.xlane.xlu0 %888
  %v890 = vsel %vm178, %v850, 0.0
  %891 = vadd.xlane.f32.xlu0 %v890
  %v892 = vpop.xlane.xlu0 %891
  %v893 = vsel %vm178, %v851, 0.0
  %894 = vadd.xlane.f32.xlu0 %v893
  %v895 = vpop.xlane.xlu0 %894
  %v896 = vsel %vm178, %v852, 0.0
  %897 = vadd.xlane.f32.xlu0 %v896
  %v898 = vpop.xlane.xlu0 %897
  %v899 = vsel %vm178, %v853, 0.0
  %900 = vadd.xlane.f32.xlu0 %v899
  %v901 = vpop.xlane.xlu0 %900
  %v902 = vsel %vm178, %v854, 0.0
  %903 = vadd.xlane.f32.xlu0 %v902
  %v904 = vpop.xlane.xlu0 %903
  %v905 = vsel %vm178, %v855, 0.0
  %906 = vadd.xlane.f32.xlu0 %v905
  %v907 = vpop.xlane.xlu0 %906
  %v908 = vsel %vm178, %v856, 0.0
  %909 = vadd.xlane.f32.xlu0 %v908
  %v910 = vpop.xlane.xlu0 %909
  %v911 = vsel %vm178, %v857, 0.0
  %912 = vadd.xlane.f32.xlu0 %v911
  %v913 = vpop.xlane.xlu0 %912
  %v914 = vsel %vm178, %v858, 0.0
  %915 = vadd.xlane.f32.xlu0 %v914
  %v916 = vpop.xlane.xlu0 %915
  %v917 = vsel %vm178, %v859, 0.0
  %918 = vadd.xlane.f32.xlu0 %v917
  %v919 = vpop.xlane.xlu0 %918
  %v920 = vsel %vm178, %v860, 0.0
  %921 = vadd.xlane.f32.xlu0 %v920
  %v922 = vpop.xlane.xlu0 %921
  %v923 = vsel %vm178, %v861, 0.0
  %924 = vadd.xlane.f32.xlu0 %v923
  %v925 = vpop.xlane.xlu0 %924
  %v926 = vsel %vm178, %v862, 0.0
  %927 = vadd.xlane.f32.xlu0 %v926
  %v928 = vpop.xlane.xlu0 %927
  %v929 = vsel %vm178, %v863, 0.0
  %930 = vadd.xlane.f32.xlu0 %v929
  %v931 = vpop.xlane.xlu0 %930
  %v932 = vsel %vm178, %v864, 0.0
  %933 = vadd.xlane.f32.xlu0 %v932
  %v934 = vpop.xlane.xlu0 %933
  %v935 = vsel %vm178, %v865, 0.0
  %936 = vadd.xlane.f32.xlu0 %v935
  %v937 = vpop.xlane.xlu0 %936
  %v938 = vsel %vm178, %v866, 0.0
  %939 = vadd.xlane.f32.xlu0 %v938
  %v940 = vpop.xlane.xlu0 %939
  %v941 = vsel %vm178, %v867, 0.0
  %942 = vadd.xlane.f32.xlu0 %v941
  %v943 = vpop.xlane.xlu0 %942
  %v944 = vsel %vm178, %v868, 0.0
  %945 = vadd.xlane.f32.xlu0 %v944
  %v946 = vpop.xlane.xlu0 %945
  %v947 = vsel %vm178, %v869, 0.0
  %948 = vadd.xlane.f32.xlu0 %v947
  %v949 = vpop.xlane.xlu0 %948
  %v950 = vsel %vm178, %v870, 0.0
  %951 = vadd.xlane.f32.xlu0 %v950
  %v952 = vpop.xlane.xlu0 %951
  %v953 = vsel %vm178, %v871, 0.0
  %954 = vadd.xlane.f32.xlu0 %v953
  %v955 = vpop.xlane.xlu0 %954
  %v956 = vsel %vm178, %v872, 0.0
  %957 = vadd.xlane.f32.xlu0 %v956
  %v958 = vpop.xlane.xlu0 %957
  %v959 = vsel %vm178, %v873, 0.0
  %960 = vadd.xlane.f32.xlu0 %v959
  %v961 = vpop.xlane.xlu0 %960
  %v962 = vsel %vm178, %v874, 0.0
  %963 = vadd.xlane.f32.xlu0 %v962
  %v964 = vpop.xlane.xlu0 %963
  %v965 = vsel %vm178, %v875, 0.0
  %966 = vadd.xlane.f32.xlu0 %v965
  %v967 = vpop.xlane.xlu0 %966
  %v968 = vsel %vm178, %v876, 0.0
  %969 = vadd.xlane.f32.xlu0 %v968
  %v970 = vpop.xlane.xlu0 %969
  %v971 = vsel %vm178, %v877, 0.0
  %972 = vadd.xlane.f32.xlu0 %v971
  %v973 = vpop.xlane.xlu0 %972
  %v974 = vmul.f32 %v880, %v781
  %v975 = vmul.f32 %v883, %v781
  %v976 = vmul.f32 %v886, %v781
  %v977 = vmul.f32 %v889, %v781
  %v978 = vmul.f32 %v892, %v781
  %v979 = vmul.f32 %v895, %v781
  %v980 = vmul.f32 %v898, %v781
  %v981 = vmul.f32 %v901, %v781
  %v982 = vmul.f32 %v904, %v781
  %v983 = vmul.f32 %v907, %v781
  %v984 = vmul.f32 %v910, %v781
  %v985 = vmul.f32 %v913, %v781
  %v986 = vmul.f32 %v916, %v781
  %v987 = vmul.f32 %v919, %v781
  %v988 = vmul.f32 %v922, %v781
  %v989 = vmul.f32 %v925, %v781
  %v990 = vmul.f32 %v928, %v781
  %v991 = vmul.f32 %v931, %v781
  %v992 = vmul.f32 %v934, %v781
  %v993 = vmul.f32 %v937, %v781
  %v994 = vmul.f32 %v940, %v781
  %v995 = vmul.f32 %v943, %v781
  %v996 = vmul.f32 %v946, %v781
  %v997 = vmul.f32 %v949, %v781
  %v998 = vmul.f32 %v952, %v781
  %v999 = vmul.f32 %v955, %v781
  %v1000 = vmul.f32 %v958, %v781
  %v1001 = vmul.f32 %v961, %v781
  %v1002 = vmul.f32 %v964, %v781
  %v1003 = vmul.f32 %v967, %v781
  %v1004 = vmul.f32 %v970, %v781
  %v1005 = vmul.f32 %v973, %v781
  %v1006 = vadd.f32 %v974, 1e-05
  %v1007 = vadd.f32 %v975, 1e-05
  %v1008 = vadd.f32 %v976, 1e-05
  %v1009 = vadd.f32 %v977, 1e-05
  %v1010 = vadd.f32 %v978, 1e-05
  %v1011 = vadd.f32 %v979, 1e-05
  %v1012 = vadd.f32 %v980, 1e-05
  %v1013 = vadd.f32 %v981, 1e-05
  %v1014 = vadd.f32 %v982, 1e-05
  %v1015 = vadd.f32 %v983, 1e-05
  %v1016 = vadd.f32 %v984, 1e-05
  %v1017 = vadd.f32 %v985, 1e-05
  %v1018 = vadd.f32 %v986, 1e-05
  %v1019 = vadd.f32 %v987, 1e-05
  %v1020 = vadd.f32 %v988, 1e-05
  %v1021 = vadd.f32 %v989, 1e-05
  %v1022 = vadd.f32 %v990, 1e-05
  %v1023 = vadd.f32 %v991, 1e-05
  %v1024 = vadd.f32 %v992, 1e-05
  %v1025 = vadd.f32 %v993, 1e-05
  %v1026 = vadd.f32 %v994, 1e-05
  %v1027 = vadd.f32 %v995, 1e-05
  %v1028 = vadd.f32 %v996, 1e-05
  %v1029 = vadd.f32 %v997, 1e-05
  %v1030 = vadd.f32 %v998, 1e-05
  %v1031 = vadd.f32 %v999, 1e-05
  %v1032 = vadd.f32 %v1000, 1e-05
  %v1033 = vadd.f32 %v1001, 1e-05
  %v1034 = vadd.f32 %v1002, 1e-05
  %v1035 = vadd.f32 %v1003, 1e-05
  %v1036 = vadd.f32 %v1004, 1e-05
  %v1037 = vadd.f32 %v1005, 1e-05
  %v1038 = vrsqrt.pop %v1006
  %v1039 = vrsqrt.pop %v1007
  %v1040 = vrsqrt.pop %v1008
  %v1041 = vrsqrt.pop %v1009
  %v1042 = vrsqrt.pop %v1010
  %v1043 = vrsqrt.pop %v1011
  %v1044 = vrsqrt.pop %v1012
  %v1045 = vrsqrt.pop %v1013
  %v1046 = vrsqrt.pop %v1014
  %v1047 = vrsqrt.pop %v1015
  %v1048 = vrsqrt.pop %v1016
  %v1049 = vrsqrt.pop %v1017
  %v1050 = vrsqrt.pop %v1018
  %v1051 = vrsqrt.pop %v1019
  %v1052 = vrsqrt.pop %v1020
  %v1053 = vrsqrt.pop %v1021
  %v1054 = vrsqrt.pop %v1022
  %v1055 = vrsqrt.pop %v1023
  %v1056 = vrsqrt.pop %v1024
  %v1057 = vrsqrt.pop %v1025
  %v1058 = vrsqrt.pop %v1026
  %v1059 = vrsqrt.pop %v1027
  %v1060 = vrsqrt.pop %v1028
  %v1061 = vrsqrt.pop %v1029
  %v1062 = vrsqrt.pop %v1030
  %v1063 = vrsqrt.pop %v1031
  %v1064 = vrsqrt.pop %v1032
  %v1065 = vrsqrt.pop %v1033
  %v1066 = vrsqrt.pop %v1034
  %v1067 = vrsqrt.pop %v1035
  %v1068 = vrsqrt.pop %v1036
  %v1069 = vrsqrt.pop %v1037
  %v1070 = vmul.f32 %v814, %v1038
  %v1071 = vmul.f32 %v815, %v1039
  %v1072 = vmul.f32 %v816, %v1040
  %v1073 = vmul.f32 %v817, %v1041
  %v1074 = vmul.f32 %v818, %v1042
  %v1075 = vmul.f32 %v819, %v1043
  %v1076 = vmul.f32 %v820, %v1044
  %v1077 = vmul.f32 %v821, %v1045
  %v1078 = vmul.f32 %v822, %v1046
  %v1079 = vmul.f32 %v823, %v1047
  %v1080 = vmul.f32 %v824, %v1048
  %v1081 = vmul.f32 %v825, %v1049
  %v1082 = vmul.f32 %v826, %v1050
  %v1083 = vmul.f32 %v827, %v1051
  %v1084 = vmul.f32 %v828, %v1052
  %v1085 = vmul.f32 %v829, %v1053
  %v1086 = vmul.f32 %v830, %v1054
  %v1087 = vmul.f32 %v831, %v1055
  %v1088 = vmul.f32 %v832, %v1056
  %v1089 = vmul.f32 %v833, %v1057
  %v1090 = vmul.f32 %v834, %v1058
  %v1091 = vmul.f32 %v835, %v1059
  %v1092 = vmul.f32 %v836, %v1060
  %v1093 = vmul.f32 %v837, %v1061
  %v1094 = vmul.f32 %v838, %v1062
  %v1095 = vmul.f32 %v839, %v1063
  %v1096 = vmul.f32 %v840, %v1064
  %v1097 = vmul.f32 %v841, %v1065
  %v1098 = vmul.f32 %v842, %v1066
  %v1099 = vmul.f32 %v843, %v1067
  %v1100 = vmul.f32 %v844, %v1068
  %v1101 = vmul.f32 %v845, %v1069
  %v1102 = vld [vmem:[%s5] sm:$0x1]
  %v1104 = vlaneseq
  %v1105 = vshrl.u32 %v1104, 7
  %v1106 = vsub.s32 0, %v1105
  %v1107 = vrot.slane %v1102, %v1106
  %v1109 = vmul.f32 %v1070, %v1107
  %v1110 = vmul.f32 %v1071, %v1107
  %v1111 = vmul.f32 %v1072, %v1107
  %v1112 = vmul.f32 %v1073, %v1107
  %v1113 = vmul.f32 %v1074, %v1107
  %v1114 = vmul.f32 %v1075, %v1107
  %v1115 = vmul.f32 %v1076, %v1107
  %v1116 = vmul.f32 %v1077, %v1107
  %v1117 = vmul.f32 %v1078, %v1107
  %v1118 = vmul.f32 %v1079, %v1107
  %v1119 = vmul.f32 %v1080, %v1107
  %v1120 = vmul.f32 %v1081, %v1107
  %v1121 = vmul.f32 %v1082, %v1107
  %v1122 = vmul.f32 %v1083, %v1107
  %v1123 = vmul.f32 %v1084, %v1107
  %v1124 = vmul.f32 %v1085, %v1107
  %v1125 = vmul.f32 %v1086, %v1107
  %v1126 = vmul.f32 %v1087, %v1107
  %v1127 = vmul.f32 %v1088, %v1107
  %v1128 = vmul.f32 %v1089, %v1107
  %v1129 = vmul.f32 %v1090, %v1107
  %v1130 = vmul.f32 %v1091, %v1107
  %v1131 = vmul.f32 %v1092, %v1107
  %v1132 = vmul.f32 %v1093, %v1107
  %v1133 = vmul.f32 %v1094, %v1107
  %v1134 = vmul.f32 %v1095, %v1107
  %v1135 = vmul.f32 %v1096, %v1107
  %v1136 = vmul.f32 %v1097, %v1107
  %v1137 = vmul.f32 %v1098, %v1107
  %v1138 = vmul.f32 %v1099, %v1107
  %v1139 = vmul.f32 %v1100, %v1107
  %v1140 = vmul.f32 %v1101, %v1107
  %v1141 = vld [vmem:[%s6] sm:$0x1]
  %v1143 = vlaneseq
  %v1144 = vshrl.u32 %v1143, 7
  %v1145 = vsub.s32 0, %v1144
  %v1146 = vrot.slane %v1141, %v1145
  %v1148 = vadd.f32 %v1109, %v1146
  %v1149 = vadd.f32 %v1110, %v1146
  %v1150 = vadd.f32 %v1111, %v1146
  %v1151 = vadd.f32 %v1112, %v1146
  %v1152 = vadd.f32 %v1113, %v1146
  %v1153 = vadd.f32 %v1114, %v1146
  %v1154 = vadd.f32 %v1115, %v1146
  %v1155 = vadd.f32 %v1116, %v1146
  %v1156 = vadd.f32 %v1117, %v1146
  %v1157 = vadd.f32 %v1118, %v1146
  %v1158 = vadd.f32 %v1119, %v1146
  %v1159 = vadd.f32 %v1120, %v1146
  %v1160 = vadd.f32 %v1121, %v1146
  %v1161 = vadd.f32 %v1122, %v1146
  %v1162 = vadd.f32 %v1123, %v1146
  %v1163 = vadd.f32 %v1124, %v1146
  %v1164 = vadd.f32 %v1125, %v1146
  %v1165 = vadd.f32 %v1126, %v1146
  %v1166 = vadd.f32 %v1127, %v1146
  %v1167 = vadd.f32 %v1128, %v1146
  %v1168 = vadd.f32 %v1129, %v1146
  %v1169 = vadd.f32 %v1130, %v1146
  %v1170 = vadd.f32 %v1131, %v1146
  %v1171 = vadd.f32 %v1132, %v1146
  %v1172 = vadd.f32 %v1133, %v1146
  %v1173 = vadd.f32 %v1134, %v1146
  %v1174 = vadd.f32 %v1135, %v1146
  %v1175 = vadd.f32 %v1136, %v1146
  %v1176 = vadd.f32 %v1137, %v1146
  %v1177 = vadd.f32 %v1138, %v1146
  %v1178 = vadd.f32 %v1139, %v1146
  %v1179 = vadd.f32 %v1140, %v1146
  %1180 = vst.msk [vmem:[%s11] sm:$0xff] %vm178, %v1148
  %1181 = vst.msk [vmem:[%s11 + $0x8] sm:$0xff] %vm178, %v1149
  %1182 = vst.msk [vmem:[%s11 + $0x10] sm:$0xff] %vm178, %v1150
  %1183 = vst.msk [vmem:[%s11 + $0x18] sm:$0xff] %vm178, %v1151
  %1184 = vst.msk [vmem:[%s11 + $0x20] sm:$0xff] %vm178, %v1152
  %1185 = vst.msk [vmem:[%s11 + $0x28] sm:$0xff] %vm178, %v1153
  %1186 = vst.msk [vmem:[%s11 + $0x30] sm:$0xff] %vm178, %v1154
  %1187 = vst.msk [vmem:[%s11 + $0x38] sm:$0xff] %vm178, %v1155
  %1188 = vst.msk [vmem:[%s11 + $0x40] sm:$0xff] %vm178, %v1156
  %1189 = vst.msk [vmem:[%s11 + $0x48] sm:$0xff] %vm178, %v1157
  %1190 = vst.msk [vmem:[%s11 + $0x50] sm:$0xff] %vm178, %v1158
  %1191 = vst.msk [vmem:[%s11 + $0x58] sm:$0xff] %vm178, %v1159
  %1192 = vst.msk [vmem:[%s11 + $0x60] sm:$0xff] %vm178, %v1160
  %1193 = vst.msk [vmem:[%s11 + $0x68] sm:$0xff] %vm178, %v1161
  %1194 = vst.msk [vmem:[%s11 + $0x70] sm:$0xff] %vm178, %v1162
  %1195 = vst.msk [vmem:[%s11 + $0x78] sm:$0xff] %vm178, %v1163
  %1196 = vst.msk [vmem:[%s11 + $0x80] sm:$0xff] %vm178, %v1164
  %1197 = vst.msk [vmem:[%s11 + $0x88] sm:$0xff] %vm178, %v1165
  %1198 = vst.msk [vmem:[%s11 + $0x90] sm:$0xff] %vm178, %v1166
  %1199 = vst.msk [vmem:[%s11 + $0x98] sm:$0xff] %vm178, %v1167
  %1200 = vst.msk [vmem:[%s11 + $0xa0] sm:$0xff] %vm178, %v1168
  %1201 = vst.msk [vmem:[%s11 + $0xa8] sm:$0xff] %vm178, %v1169
  %1202 = vst.msk [vmem:[%s11 + $0xb0] sm:$0xff] %vm178, %v1170
  %1203 = vst.msk [vmem:[%s11 + $0xb8] sm:$0xff] %vm178, %v1171
  %1204 = vst.msk [vmem:[%s11 + $0xc0] sm:$0xff] %vm178, %v1172
  %1205 = vst.msk [vmem:[%s11 + $0xc8] sm:$0xff] %vm178, %v1173
  %1206 = vst.msk [vmem:[%s11 + $0xd0] sm:$0xff] %vm178, %v1174
  %1207 = vst.msk [vmem:[%s11 + $0xd8] sm:$0xff] %vm178, %v1175
  %1208 = vst.msk [vmem:[%s11 + $0xe0] sm:$0xff] %vm178, %v1176
  %1209 = vst.msk [vmem:[%s11 + $0xe8] sm:$0xff] %vm178, %v1177
  %1210 = vst.msk [vmem:[%s11 + $0xf0] sm:$0xff] %vm178, %v1178
  %1211 = vst.msk [vmem:[%s11 + $0xf8] sm:$0xff] %vm178, %v1179
  %v1212 = vpack.c.bf16 %v1149, %v1148
  %v1213 = vpack.c.bf16 %v1151, %v1150
  %v1214 = vpack.c.bf16 %v1153, %v1152
  %v1215 = vpack.c.bf16 %v1155, %v1154
  %v1216 = vpack.c.bf16 %v1157, %v1156
  %v1217 = vpack.c.bf16 %v1159, %v1158
  %v1218 = vpack.c.bf16 %v1161, %v1160
  %v1219 = vpack.c.bf16 %v1163, %v1162
  %v1220 = vpack.c.bf16 %v1165, %v1164
  %v1221 = vpack.c.bf16 %v1167, %v1166
  %v1222 = vpack.c.bf16 %v1169, %v1168
  %v1223 = vpack.c.bf16 %v1171, %v1170
  %v1224 = vpack.c.bf16 %v1173, %v1172
  %v1225 = vpack.c.bf16 %v1175, %v1174
  %v1226 = vpack.c.bf16 %v1177, %v1176
  %v1227 = vpack.c.bf16 %v1179, %v1178
  %v1228 = vld [vmem:[%s7] sm:$0xf]
  %v1229 = vld [vmem:[%s7 + $0x4] sm:$0xf]
  %v1230 = vld [vmem:[%s7 + $0x8] sm:$0xf]
  %v1231 = vld [vmem:[%s7 + $0xc] sm:$0xf]
  %v1232 = vld [vmem:[%s8] sm:$0x1]
  %v1234 = vlaneseq
  %v1235 = vshrl.u32 %v1234, 7
  %v1236 = vsub.s32 0, %v1235
  %v1237 = vrot.slane %v1232, %v1236
  %v1243 = vunpack.c.l.b16 %v1228
  %v1244 = vunpack.c.l.b16 %v1229
  %v1245 = vunpack.c.l.b16 %v1230
  %v1246 = vunpack.c.l.b16 %v1231
  %v1247 = vpack.c.b16 %v1244, %v1243
  %v1248 = vpack.c.b16 %v1246, %v1245
  %v1252 = vsel %vm178, %v1212, 0
  %v1255 = vsel %vm178, %v1213, 0
  %v1258 = vsel %vm178, %v1214, 0
  %v1261 = vsel %vm178, %v1215, 0
  %v1264 = vsel %vm178, %v1216, 0
  %v1267 = vsel %vm178, %v1217, 0
  %v1270 = vsel %vm178, %v1218, 0
  %v1273 = vsel %vm178, %v1219, 0
  %v1276 = vsel %vm178, %v1220, 0
  %v1279 = vsel %vm178, %v1221, 0
  %v1282 = vsel %vm178, %v1222, 0
  %v1285 = vsel %vm178, %v1223, 0
  %v1288 = vsel %vm178, %v1224, 0
  %v1291 = vsel %vm178, %v1225, 0
  %v1294 = vsel %vm178, %v1226, 0
  %v1297 = vsel %vm178, %v1227, 0
  %1299 = vmatprep.subr.bf16.mxu0 0
  %1300 = vmatpush1.bf16.msra.mxu0 0
  %1301 = vmatprep.subr.bf16.mxu0 0
  %1302 = vmatpush1.bf16.msra.mxu0 0
  %1303 = vmatprep.subr.bf16.mxu0 0
  %1304 = vmatpush1.bf16.msra.mxu0 0
  %1305 = vmatprep.subr.bf16.mxu0 0
  %1306 = vmatpush1.bf16.msra.mxu0 0
  %1307 = vmatprep.subr.bf16.mxu0 0
  %1308 = vmatpush1.bf16.msra.mxu0 0
  %1309 = vmatprep.subr.bf16.mxu0 0
  %1310 = vmatpush1.bf16.msra.mxu0 0
  %1311 = vmatprep.subr.bf16.mxu0 0
  %1312 = vmatpush1.bf16.msra.mxu0 %v1248
  %1313 = vmatprep.subr.bf16.mxu0 0
  %1314 = vmatpush1.bf16.msra.mxu0 %v1247
  %1315 = vmatprep.subr.bf16.mxu0 0
  %1316 = vmatpush2.bf16.msra.mxu0 0
  %1317 = vmatprep.subr.bf16.mxu0 0
  %1318 = vmatpush2.bf16.msra.mxu0 0
  %1319 = vmatprep.subr.bf16.mxu0 0
  %1320 = vmatpush2.bf16.msra.mxu0 0
  %1321 = vmatprep.subr.bf16.mxu0 0
  %1322 = vmatpush2.bf16.msra.mxu0 0
  %1323 = vmatprep.subr.bf16.mxu0 0
  %1324 = vmatpush2.bf16.msra.mxu0 0
  %1325 = vmatprep.subr.bf16.mxu0 0
  %1326 = vmatpush2.bf16.msra.mxu0 0
  %1327 = vmatprep.subr.bf16.mxu0 0
  %1328 = vmatpush2.bf16.msra.mxu0 0
  %1329 = vmatprep.subr.bf16.mxu0 0
  %1330 = vmatpush2.bf16.msra.mxu0 0
  %1331 = vmatprep.mubr.bf16.mxu0 0
  %1332 = vmatmul.mubr.bf16.gmra.mxu0 %v1252
  %v1333 = vpop.f32.mrf.mxu0
  %v1334 = vadd.f32 %v1237, %v1333
  %v1335 = vpop.f32.mrf.mxu0
  %v1336 = vpop.f32.mrf.mxu0
  %v1337 = vadd.f32 %v1237, %v1336
  %v1338 = vpop.f32.mrf.mxu0
  %1339 = vmatprep.mubr.bf16.mxu0 0
  %1340 = vmatmul.mubr.bf16.gmra.mxu0 %v1255
  %v1341 = vpop.f32.mrf.mxu0
  %v1342 = vadd.f32 %v1237, %v1341
  %v1343 = vpop.f32.mrf.mxu0
  %v1344 = vpop.f32.mrf.mxu0
  %v1345 = vadd.f32 %v1237, %v1344
  %v1346 = vpop.f32.mrf.mxu0
  %1347 = vmatprep.mubr.bf16.mxu0 0
  %1348 = vmatmul.mubr.bf16.gmra.mxu0 %v1258
  %v1349 = vpop.f32.mrf.mxu0
  %v1350 = vadd.f32 %v1237, %v1349
  %v1351 = vpop.f32.mrf.mxu0
  %v1352 = vpop.f32.mrf.mxu0
  %v1353 = vadd.f32 %v1237, %v1352
  %v1354 = vpop.f32.mrf.mxu0
  %1355 = vmatprep.mubr.bf16.mxu0 0
  %1356 = vmatmul.mubr.bf16.gmra.mxu0 %v1261
  %v1357 = vpop.f32.mrf.mxu0
  %v1358 = vadd.f32 %v1237, %v1357
  %v1359 = vpop.f32.mrf.mxu0
  %v1360 = vpop.f32.mrf.mxu0
  %v1361 = vadd.f32 %v1237, %v1360
  %v1362 = vpop.f32.mrf.mxu0
  %1363 = vmatprep.mubr.bf16.mxu0 0
  %1364 = vmatmul.mubr.bf16.gmra.mxu0 %v1264
  %v1365 = vpop.f32.mrf.mxu0
  %v1366 = vadd.f32 %v1237, %v1365
  %v1367 = vpop.f32.mrf.mxu0
  %v1368 = vpop.f32.mrf.mxu0
  %v1369 = vadd.f32 %v1237, %v1368
  %v1370 = vpop.f32.mrf.mxu0
  %1371 = vmatprep.mubr.bf16.mxu0 0
  %1372 = vmatmul.mubr.bf16.gmra.mxu0 %v1267
  %v1373 = vpop.f32.mrf.mxu0
  %v1374 = vadd.f32 %v1237, %v1373
  %v1375 = vpop.f32.mrf.mxu0
  %v1376 = vpop.f32.mrf.mxu0
  %v1377 = vadd.f32 %v1237, %v1376
  %v1378 = vpop.f32.mrf.mxu0
  %1379 = vmatprep.mubr.bf16.mxu0 0
  %1380 = vmatmul.mubr.bf16.gmra.mxu0 %v1270
  %v1381 = vpop.f32.mrf.mxu0
  %v1382 = vadd.f32 %v1237, %v1381
  %v1383 = vpop.f32.mrf.mxu0
  %v1384 = vpop.f32.mrf.mxu0
  %v1385 = vadd.f32 %v1237, %v1384
  %v1386 = vpop.f32.mrf.mxu0
  %1387 = vmatprep.mubr.bf16.mxu0 0
  %1388 = vmatmul.mubr.bf16.gmra.mxu0 %v1273
  %v1389 = vpop.f32.mrf.mxu0
  %v1390 = vadd.f32 %v1237, %v1389
  %v1391 = vpop.f32.mrf.mxu0
  %v1392 = vpop.f32.mrf.mxu0
  %v1393 = vadd.f32 %v1237, %v1392
  %v1394 = vpop.f32.mrf.mxu0
  %1395 = vmatprep.mubr.bf16.mxu0 0
  %1396 = vmatmul.mubr.bf16.gmra.mxu0 %v1276
  %v1397 = vpop.f32.mrf.mxu0
  %v1398 = vadd.f32 %v1237, %v1397
  %v1399 = vpop.f32.mrf.mxu0
  %v1400 = vpop.f32.mrf.mxu0
  %v1401 = vadd.f32 %v1237, %v1400
  %v1402 = vpop.f32.mrf.mxu0
  %1403 = vmatprep.mubr.bf16.mxu0 0
  %1404 = vmatmul.mubr.bf16.gmra.mxu0 %v1279
  %v1405 = vpop.f32.mrf.mxu0
  %v1406 = vadd.f32 %v1237, %v1405
  %v1407 = vpop.f32.mrf.mxu0
  %v1408 = vpop.f32.mrf.mxu0
  %v1409 = vadd.f32 %v1237, %v1408
  %v1410 = vpop.f32.mrf.mxu0
  %1411 = vmatprep.mubr.bf16.mxu0 0
  %1412 = vmatmul.mubr.bf16.gmra.mxu0 %v1282
  %v1413 = vpop.f32.mrf.mxu0
  %v1414 = vadd.f32 %v1237, %v1413
  %v1415 = vpop.f32.mrf.mxu0
  %v1416 = vpop.f32.mrf.mxu0
  %v1417 = vadd.f32 %v1237, %v1416
  %v1418 = vpop.f32.mrf.mxu0
  %1419 = vmatprep.mubr.bf16.mxu0 0
  %1420 = vmatmul.mubr.bf16.gmra.mxu0 %v1285
  %v1421 = vpop.f32.mrf.mxu0
  %v1422 = vadd.f32 %v1237, %v1421
  %v1423 = vpop.f32.mrf.mxu0
  %v1424 = vpop.f32.mrf.mxu0
  %v1425 = vadd.f32 %v1237, %v1424
  %v1426 = vpop.f32.mrf.mxu0
  %1427 = vmatprep.mubr.bf16.mxu0 0
  %1428 = vmatmul.mubr.bf16.gmra.mxu0 %v1288
  %v1429 = vpop.f32.mrf.mxu0
  %v1430 = vadd.f32 %v1237, %v1429
  %v1431 = vpop.f32.mrf.mxu0
  %v1432 = vpop.f32.mrf.mxu0
  %v1433 = vadd.f32 %v1237, %v1432
  %v1434 = vpop.f32.mrf.mxu0
  %1435 = vmatprep.mubr.bf16.mxu0 0
  %1436 = vmatmul.mubr.bf16.gmra.mxu0 %v1291
  %v1437 = vpop.f32.mrf.mxu0
  %v1438 = vadd.f32 %v1237, %v1437
  %v1439 = vpop.f32.mrf.mxu0
  %v1440 = vpop.f32.mrf.mxu0
  %v1441 = vadd.f32 %v1237, %v1440
  %v1442 = vpop.f32.mrf.mxu0
  %1443 = vmatprep.mubr.bf16.mxu0 0
  %1444 = vmatmul.mubr.bf16.gmra.mxu0 %v1294
  %v1445 = vpop.f32.mrf.mxu0
  %v1446 = vadd.f32 %v1237, %v1445
  %v1447 = vpop.f32.mrf.mxu0
  %v1448 = vpop.f32.mrf.mxu0
  %v1449 = vadd.f32 %v1237, %v1448
  %v1450 = vpop.f32.mrf.mxu0
  %1451 = vmatprep.mubr.bf16.mxu0 0
  %1452 = vmatmul.mubr.bf16.gmra.mxu0 %v1297
  %v1453 = vpop.f32.mrf.mxu0
  %v1454 = vadd.f32 %v1237, %v1453
  %v1455 = vpop.f32.mrf.mxu0
  %v1456 = vpop.f32.mrf.mxu0
  %v1457 = vadd.f32 %v1237, %v1456
  %v1458 = vpop.f32.mrf.mxu0
  %1459 = vdwg.mxu0
  %v1460 = vmax.f32 %v1334, 0.0
  %v1461 = vmax.f32 %v1337, 0.0
  %v1462 = vmax.f32 %v1342, 0.0
  %v1463 = vmax.f32 %v1345, 0.0
  %v1464 = vmax.f32 %v1350, 0.0
  %v1465 = vmax.f32 %v1353, 0.0
  %v1466 = vmax.f32 %v1358, 0.0
  %v1467 = vmax.f32 %v1361, 0.0
  %v1468 = vmax.f32 %v1366, 0.0
  %v1469 = vmax.f32 %v1369, 0.0
  %v1470 = vmax.f32 %v1374, 0.0
  %v1471 = vmax.f32 %v1377, 0.0
  %v1472 = vmax.f32 %v1382, 0.0
  %v1473 = vmax.f32 %v1385, 0.0
  %v1474 = vmax.f32 %v1390, 0.0
  %v1475 = vmax.f32 %v1393, 0.0
  %v1476 = vmax.f32 %v1398, 0.0
  %v1477 = vmax.f32 %v1401, 0.0
  %v1478 = vmax.f32 %v1406, 0.0
  %v1479 = vmax.f32 %v1409, 0.0
  %v1480 = vmax.f32 %v1414, 0.0
  %v1481 = vmax.f32 %v1417, 0.0
  %v1482 = vmax.f32 %v1422, 0.0
  %v1483 = vmax.f32 %v1425, 0.0
  %v1484 = vmax.f32 %v1430, 0.0
  %v1485 = vmax.f32 %v1433, 0.0
  %v1486 = vmax.f32 %v1438, 0.0
  %v1487 = vmax.f32 %v1441, 0.0
  %v1488 = vmax.f32 %v1446, 0.0
  %v1489 = vmax.f32 %v1449, 0.0
  %v1490 = vmax.f32 %v1454, 0.0
  %v1491 = vmax.f32 %v1457, 0.0
  %v1492 = vld [vmem:[%s9] sm:$0x1]
  %v1494 = vlaneseq
  %v1495 = vshrl.u32 %v1494, 7
  %v1496 = vsub.s32 0, %v1495
  %v1497 = vrot.slane %v1492, %v1496
  %v1499 = vmul.f32 %v1460, %v1497
  %v1500 = vmul.f32 %v1461, %v1497
  %v1501 = vmul.f32 %v1462, %v1497
  %v1502 = vmul.f32 %v1463, %v1497
  %v1503 = vmul.f32 %v1464, %v1497
  %v1504 = vmul.f32 %v1465, %v1497
  %v1505 = vmul.f32 %v1466, %v1497
  %v1506 = vmul.f32 %v1467, %v1497
  %v1507 = vmul.f32 %v1468, %v1497
  %v1508 = vmul.f32 %v1469, %v1497
  %v1509 = vmul.f32 %v1470, %v1497
  %v1510 = vmul.f32 %v1471, %v1497
  %v1511 = vmul.f32 %v1472, %v1497
  %v1512 = vmul.f32 %v1473, %v1497
  %v1513 = vmul.f32 %v1474, %v1497
  %v1514 = vmul.f32 %v1475, %v1497
  %v1515 = vmul.f32 %v1476, %v1497
  %v1516 = vmul.f32 %v1477, %v1497
  %v1517 = vmul.f32 %v1478, %v1497
  %v1518 = vmul.f32 %v1479, %v1497
  %v1519 = vmul.f32 %v1480, %v1497
  %v1520 = vmul.f32 %v1481, %v1497
  %v1521 = vmul.f32 %v1482, %v1497
  %v1522 = vmul.f32 %v1483, %v1497
  %v1523 = vmul.f32 %v1484, %v1497
  %v1524 = vmul.f32 %v1485, %v1497
  %v1525 = vmul.f32 %v1486, %v1497
  %v1526 = vmul.f32 %v1487, %v1497
  %v1527 = vmul.f32 %v1488, %v1497
  %v1528 = vmul.f32 %v1489, %v1497
  %v1529 = vmul.f32 %v1490, %v1497
  %v1530 = vmul.f32 %v1491, %v1497
  %vm1531 = vcmask 130048
  %v1532 = vsel %vm1531, %v1499, 0.0
  %1533 = vadd.xlane.f32.xlu0 %v1532
  %v1534 = vpop.xlane.xlu0 %1533
  %v1535 = vsel %vm1531, %v1500, 0.0
  %1536 = vadd.xlane.f32.xlu0 %v1535
  %v1537 = vpop.xlane.xlu0 %1536
  %v1538 = vsel %vm1531, %v1501, 0.0
  %1539 = vadd.xlane.f32.xlu0 %v1538
  %v1540 = vpop.xlane.xlu0 %1539
  %v1541 = vsel %vm1531, %v1502, 0.0
  %1542 = vadd.xlane.f32.xlu0 %v1541
  %v1543 = vpop.xlane.xlu0 %1542
  %v1544 = vsel %vm1531, %v1503, 0.0
  %1545 = vadd.xlane.f32.xlu0 %v1544
  %v1546 = vpop.xlane.xlu0 %1545
  %v1547 = vsel %vm1531, %v1504, 0.0
  %1548 = vadd.xlane.f32.xlu0 %v1547
  %v1549 = vpop.xlane.xlu0 %1548
  %v1550 = vsel %vm1531, %v1505, 0.0
  %1551 = vadd.xlane.f32.xlu0 %v1550
  %v1552 = vpop.xlane.xlu0 %1551
  %v1553 = vsel %vm1531, %v1506, 0.0
  %1554 = vadd.xlane.f32.xlu0 %v1553
  %v1555 = vpop.xlane.xlu0 %1554
  %v1556 = vsel %vm1531, %v1507, 0.0
  %1557 = vadd.xlane.f32.xlu0 %v1556
  %v1558 = vpop.xlane.xlu0 %1557
  %v1559 = vsel %vm1531, %v1508, 0.0
  %1560 = vadd.xlane.f32.xlu0 %v1559
  %v1561 = vpop.xlane.xlu0 %1560
  %v1562 = vsel %vm1531, %v1509, 0.0
  %1563 = vadd.xlane.f32.xlu0 %v1562
  %v1564 = vpop.xlane.xlu0 %1563
  %v1565 = vsel %vm1531, %v1510, 0.0
  %1566 = vadd.xlane.f32.xlu0 %v1565
  %v1567 = vpop.xlane.xlu0 %1566
  %v1568 = vsel %vm1531, %v1511, 0.0
  %1569 = vadd.xlane.f32.xlu0 %v1568
  %v1570 = vpop.xlane.xlu0 %1569
  %v1571 = vsel %vm1531, %v1512, 0.0
  %1572 = vadd.xlane.f32.xlu0 %v1571
  %v1573 = vpop.xlane.xlu0 %1572
  %v1574 = vsel %vm1531, %v1513, 0.0
  %1575 = vadd.xlane.f32.xlu0 %v1574
  %v1576 = vpop.xlane.xlu0 %1575
  %v1577 = vsel %vm1531, %v1514, 0.0
  %1578 = vadd.xlane.f32.xlu0 %v1577
  %v1579 = vpop.xlane.xlu0 %1578
  %v1580 = vsel %vm1531, %v1515, 0.0
  %1581 = vadd.xlane.f32.xlu0 %v1580
  %v1582 = vpop.xlane.xlu0 %1581
  %v1583 = vsel %vm1531, %v1516, 0.0
  %1584 = vadd.xlane.f32.xlu0 %v1583
  %v1585 = vpop.xlane.xlu0 %1584
  %v1586 = vsel %vm1531, %v1517, 0.0
  %1587 = vadd.xlane.f32.xlu0 %v1586
  %v1588 = vpop.xlane.xlu0 %1587
  %v1589 = vsel %vm1531, %v1518, 0.0
  %1590 = vadd.xlane.f32.xlu0 %v1589
  %v1591 = vpop.xlane.xlu0 %1590
  %v1592 = vsel %vm1531, %v1519, 0.0
  %1593 = vadd.xlane.f32.xlu0 %v1592
  %v1594 = vpop.xlane.xlu0 %1593
  %v1595 = vsel %vm1531, %v1520, 0.0
  %1596 = vadd.xlane.f32.xlu0 %v1595
  %v1597 = vpop.xlane.xlu0 %1596
  %v1598 = vsel %vm1531, %v1521, 0.0
  %1599 = vadd.xlane.f32.xlu0 %v1598
  %v1600 = vpop.xlane.xlu0 %1599
  %v1601 = vsel %vm1531, %v1522, 0.0
  %1602 = vadd.xlane.f32.xlu0 %v1601
  %v1603 = vpop.xlane.xlu0 %1602
  %v1604 = vsel %vm1531, %v1523, 0.0
  %1605 = vadd.xlane.f32.xlu0 %v1604
  %v1606 = vpop.xlane.xlu0 %1605
  %v1607 = vsel %vm1531, %v1524, 0.0
  %1608 = vadd.xlane.f32.xlu0 %v1607
  %v1609 = vpop.xlane.xlu0 %1608
  %v1610 = vsel %vm1531, %v1525, 0.0
  %1611 = vadd.xlane.f32.xlu0 %v1610
  %v1612 = vpop.xlane.xlu0 %1611
  %v1613 = vsel %vm1531, %v1526, 0.0
  %1614 = vadd.xlane.f32.xlu0 %v1613
  %v1615 = vpop.xlane.xlu0 %1614
  %v1616 = vsel %vm1531, %v1527, 0.0
  %1617 = vadd.xlane.f32.xlu0 %v1616
  %v1618 = vpop.xlane.xlu0 %1617
  %v1619 = vsel %vm1531, %v1528, 0.0
  %1620 = vadd.xlane.f32.xlu0 %v1619
  %v1621 = vpop.xlane.xlu0 %1620
  %v1622 = vsel %vm1531, %v1529, 0.0
  %1623 = vadd.xlane.f32.xlu0 %v1622
  %v1624 = vpop.xlane.xlu0 %1623
  %v1625 = vsel %vm1531, %v1530, 0.0
  %1626 = vadd.xlane.f32.xlu0 %v1625
  %v1627 = vpop.xlane.xlu0 %1626
  %v1628 = vld [vmem:[#allocation2] sm:$0x1]
  %v1630 = vlaneseq
  %v1631 = vshrl.u32 %v1630, 7
  %v1632 = vsub.s32 0, %v1631
  %v1633 = vrot.slane %v1628, %v1632
  %v1635 = vadd.f32 %v1534, %v1633
  %v1636 = vadd.f32 %v1537, %v1633
  %v1637 = vadd.f32 %v1540, %v1633
  %v1638 = vadd.f32 %v1543, %v1633
  %v1639 = vadd.f32 %v1546, %v1633
  %v1640 = vadd.f32 %v1549, %v1633
  %v1641 = vadd.f32 %v1552, %v1633
  %v1642 = vadd.f32 %v1555, %v1633
  %v1643 = vadd.f32 %v1558, %v1633
  %v1644 = vadd.f32 %v1561, %v1633
  %v1645 = vadd.f32 %v1564, %v1633
  %v1646 = vadd.f32 %v1567, %v1633
  %v1647 = vadd.f32 %v1570, %v1633
  %v1648 = vadd.f32 %v1573, %v1633
  %v1649 = vadd.f32 %v1576, %v1633
  %v1650 = vadd.f32 %v1579, %v1633
  %v1651 = vadd.f32 %v1582, %v1633
  %v1652 = vadd.f32 %v1585, %v1633
  %v1653 = vadd.f32 %v1588, %v1633
  %v1654 = vadd.f32 %v1591, %v1633
  %v1655 = vadd.f32 %v1594, %v1633
  %v1656 = vadd.f32 %v1597, %v1633
  %v1657 = vadd.f32 %v1600, %v1633
  %v1658 = vadd.f32 %v1603, %v1633
  %v1659 = vadd.f32 %v1606, %v1633
  %v1660 = vadd.f32 %v1609, %v1633
  %v1661 = vadd.f32 %v1612, %v1633
  %v1662 = vadd.f32 %v1615, %v1633
  %v1663 = vadd.f32 %v1618, %v1633
  %v1664 = vadd.f32 %v1621, %v1633
  %v1665 = vadd.f32 %v1624, %v1633
  %v1666 = vadd.f32 %v1627, %v1633
  %v1667 = vxor.u32 %v1635, 2147483648
  %v1668 = vxor.u32 %v1636, 2147483648
  %v1669 = vxor.u32 %v1637, 2147483648
  %v1670 = vxor.u32 %v1638, 2147483648
  %v1671 = vxor.u32 %v1639, 2147483648
  %v1672 = vxor.u32 %v1640, 2147483648
  %v1673 = vxor.u32 %v1641, 2147483648
  %v1674 = vxor.u32 %v1642, 2147483648
  %v1675 = vxor.u32 %v1643, 2147483648
  %v1676 = vxor.u32 %v1644, 2147483648
  %v1677 = vxor.u32 %v1645, 2147483648
  %v1678 = vxor.u32 %v1646, 2147483648
  %v1679 = vxor.u32 %v1647, 2147483648
  %v1680 = vxor.u32 %v1648, 2147483648
  %v1681 = vxor.u32 %v1649, 2147483648
  %v1682 = vxor.u32 %v1650, 2147483648
  %v1683 = vxor.u32 %v1651, 2147483648
  %v1684 = vxor.u32 %v1652, 2147483648
  %v1685 = vxor.u32 %v1653, 2147483648
  %v1686 = vxor.u32 %v1654, 2147483648
  %v1687 = vxor.u32 %v1655, 2147483648
  %v1688 = vxor.u32 %v1656, 2147483648
  %v1689 = vxor.u32 %v1657, 2147483648
  %v1690 = vxor.u32 %v1658, 2147483648
  %v1691 = vxor.u32 %v1659, 2147483648
  %v1692 = vxor.u32 %v1660, 2147483648
  %v1693 = vxor.u32 %v1661, 2147483648
  %v1694 = vxor.u32 %v1662, 2147483648
  %v1695 = vxor.u32 %v1663, 2147483648
  %v1696 = vxor.u32 %v1664, 2147483648
  %v1697 = vxor.u32 %v1665, 2147483648
  %v1698 = vxor.u32 %v1666, 2147483648
  %v1699 = vmul.f32 %v1667, 1.442695
  %v1700 = vpow.pop %v1699
  %v1701 = vmul.f32 %v1668, 1.442695
  %v1702 = vpow.pop %v1701
  %v1703 = vmul.f32 %v1669, 1.442695
  %v1704 = vpow.pop %v1703
  %v1705 = vmul.f32 %v1670, 1.442695
  %v1706 = vpow.pop %v1705
  %v1707 = vmul.f32 %v1671, 1.442695
  %v1708 = vpow.pop %v1707
  %v1709 = vmul.f32 %v1672, 1.442695
  %v1710 = vpow.pop %v1709
  %v1711 = vmul.f32 %v1673, 1.442695
  %v1712 = vpow.pop %v1711
  %v1713 = vmul.f32 %v1674, 1.442695
  %v1714 = vpow.pop %v1713
  %v1715 = vmul.f32 %v1675, 1.442695
  %v1716 = vpow.pop %v1715
  %v1717 = vmul.f32 %v1676, 1.442695
  %v1718 = vpow.pop %v1717
  %v1719 = vmul.f32 %v1677, 1.442695
  %v1720 = vpow.pop %v1719
  %v1721 = vmul.f32 %v1678, 1.442695
  %v1722 = vpow.pop %v1721
  %v1723 = vmul.f32 %v1679, 1.442695
  %v1724 = vpow.pop %v1723
  %v1725 = vmul.f32 %v1680, 1.442695
  %v1726 = vpow.pop %v1725
  %v1727 = vmul.f32 %v1681, 1.442695
  %v1728 = vpow.pop %v1727
  %v1729 = vmul.f32 %v1682, 1.442695
  %v1730 = vpow.pop %v1729
  %v1731 = vmul.f32 %v1683, 1.442695
  %v1732 = vpow.pop %v1731
  %v1733 = vmul.f32 %v1684, 1.442695
  %v1734 = vpow.pop %v1733
  %v1735 = vmul.f32 %v1685, 1.442695
  %v1736 = vpow.pop %v1735
  %v1737 = vmul.f32 %v1686, 1.442695
  %v1738 = vpow.pop %v1737
  %v1739 = vmul.f32 %v1687, 1.442695
  %v1740 = vpow.pop %v1739
  %v1741 = vmul.f32 %v1688, 1.442695
  %v1742 = vpow.pop %v1741
  %v1743 = vmul.f32 %v1689, 1.442695
  %v1744 = vpow.pop %v1743
  %v1745 = vmul.f32 %v1690, 1.442695
  %v1746 = vpow.pop %v1745
  %v1747 = vmul.f32 %v1691, 1.442695
  %v1748 = vpow.pop %v1747
  %v1749 = vmul.f32 %v1692, 1.442695
  %v1750 = vpow.pop %v1749
  %v1751 = vmul.f32 %v1693, 1.442695
  %v1752 = vpow.pop %v1751
  %v1753 = vmul.f32 %v1694, 1.442695
  %v1754 = vpow.pop %v1753
  %v1755 = vmul.f32 %v1695, 1.442695
  %v1756 = vpow.pop %v1755
  %v1757 = vmul.f32 %v1696, 1.442695
  %v1758 = vpow.pop %v1757
  %v1759 = vmul.f32 %v1697, 1.442695
  %v1760 = vpow.pop %v1759
  %v1761 = vmul.f32 %v1698, 1.442695
  %v1762 = vpow.pop %v1761
  %v1763 = vadd.f32 %v1700, 1.0
  %v1764 = vadd.f32 %v1702, 1.0
  %v1765 = vadd.f32 %v1704, 1.0
  %v1766 = vadd.f32 %v1706, 1.0
  %v1767 = vadd.f32 %v1708, 1.0
  %v1768 = vadd.f32 %v1710, 1.0
  %v1769 = vadd.f32 %v1712, 1.0
  %v1770 = vadd.f32 %v1714, 1.0
  %v1771 = vadd.f32 %v1716, 1.0
  %v1772 = vadd.f32 %v1718, 1.0
  %v1773 = vadd.f32 %v1720, 1.0
  %v1774 = vadd.f32 %v1722, 1.0
  %v1775 = vadd.f32 %v1724, 1.0
  %v1776 = vadd.f32 %v1726, 1.0
  %v1777 = vadd.f32 %v1728, 1.0
  %v1778 = vadd.f32 %v1730, 1.0
  %v1779 = vadd.f32 %v1732, 1.0
  %v1780 = vadd.f32 %v1734, 1.0
  %v1781 = vadd.f32 %v1736, 1.0
  %v1782 = vadd.f32 %v1738, 1.0
  %v1783 = vadd.f32 %v1740, 1.0
  %v1784 = vadd.f32 %v1742, 1.0
  %v1785 = vadd.f32 %v1744, 1.0
  %v1786 = vadd.f32 %v1746, 1.0
  %v1787 = vadd.f32 %v1748, 1.0
  %v1788 = vadd.f32 %v1750, 1.0
  %v1789 = vadd.f32 %v1752, 1.0
  %v1790 = vadd.f32 %v1754, 1.0
  %v1791 = vadd.f32 %v1756, 1.0
  %v1792 = vadd.f32 %v1758, 1.0
  %v1793 = vadd.f32 %v1760, 1.0
  %v1794 = vadd.f32 %v1762, 1.0
  %v1795 = vrcp.pop %v1763
  %v1796 = vmul.f32 1.0, %v1795
  %v1797 = vrcp.pop %v1764
  %v1798 = vmul.f32 1.0, %v1797
  %v1799 = vrcp.pop %v1765
  %v1800 = vmul.f32 1.0, %v1799
  %v1801 = vrcp.pop %v1766
  %v1802 = vmul.f32 1.0, %v1801
  %v1803 = vrcp.pop %v1767
  %v1804 = vmul.f32 1.0, %v1803
  %v1805 = vrcp.pop %v1768
  %v1806 = vmul.f32 1.0, %v1805
  %v1807 = vrcp.pop %v1769
  %v1808 = vmul.f32 1.0, %v1807
  %v1809 = vrcp.pop %v1770
  %v1810 = vmul.f32 1.0, %v1809
  %v1811 = vrcp.pop %v1771
  %v1812 = vmul.f32 1.0, %v1811
  %v1813 = vrcp.pop %v1772
  %v1814 = vmul.f32 1.0, %v1813
  %v1815 = vrcp.pop %v1773
  %v1816 = vmul.f32 1.0, %v1815
  %v1817 = vrcp.pop %v1774
  %v1818 = vmul.f32 1.0, %v1817
  %v1819 = vrcp.pop %v1775
  %v1820 = vmul.f32 1.0, %v1819
  %v1821 = vrcp.pop %v1776
  %v1822 = vmul.f32 1.0, %v1821
  %v1823 = vrcp.pop %v1777
  %v1824 = vmul.f32 1.0, %v1823
  %v1825 = vrcp.pop %v1778
  %v1826 = vmul.f32 1.0, %v1825
  %v1827 = vrcp.pop %v1779
  %v1828 = vmul.f32 1.0, %v1827
  %v1829 = vrcp.pop %v1780
  %v1830 = vmul.f32 1.0, %v1829
  %v1831 = vrcp.pop %v1781
  %v1832 = vmul.f32 1.0, %v1831
  %v1833 = vrcp.pop %v1782
  %v1834 = vmul.f32 1.0, %v1833
  %v1835 = vrcp.pop %v1783
  %v1836 = vmul.f32 1.0, %v1835
  %v1837 = vrcp.pop %v1784
  %v1838 = vmul.f32 1.0, %v1837
  %v1839 = vrcp.pop %v1785
  %v1840 = vmul.f32 1.0, %v1839
  %v1841 = vrcp.pop %v1786
  %v1842 = vmul.f32 1.0, %v1841
  %v1843 = vrcp.pop %v1787
  %v1844 = vmul.f32 1.0, %v1843
  %v1845 = vrcp.pop %v1788
  %v1846 = vmul.f32 1.0, %v1845
  %v1847 = vrcp.pop %v1789
  %v1848 = vmul.f32 1.0, %v1847
  %v1849 = vrcp.pop %v1790
  %v1850 = vmul.f32 1.0, %v1849
  %v1851 = vrcp.pop %v1791
  %v1852 = vmul.f32 1.0, %v1851
  %v1853 = vrcp.pop %v1792
  %v1854 = vmul.f32 1.0, %v1853
  %v1855 = vrcp.pop %v1793
  %v1856 = vmul.f32 1.0, %v1855
  %v1857 = vrcp.pop %v1794
  %v1858 = vmul.f32 1.0, %v1857
  %1860 = vset.pattern.permute.xlu0 0
  %1861 = vperm.xlu0 %1860, %v1796
  %v1862 = vpop.permute.xlu0 %1861
  %1865 = vset.pattern.permute.xlu0 0
  %1866 = vperm.xlu0 %1865, %v1798
  %v1867 = vpop.permute.xlu0 %1866
  %1870 = vset.pattern.permute.xlu0 0
  %1871 = vperm.xlu0 %1870, %v1800
  %v1872 = vpop.permute.xlu0 %1871
  %1875 = vset.pattern.permute.xlu0 0
  %1876 = vperm.xlu0 %1875, %v1802
  %v1877 = vpop.permute.xlu0 %1876
  %1880 = vset.pattern.permute.xlu0 0
  %1881 = vperm.xlu0 %1880, %v1804
  %v1882 = vpop.permute.xlu0 %1881
  %1885 = vset.pattern.permute.xlu0 0
  %1886 = vperm.xlu0 %1885, %v1806
  %v1887 = vpop.permute.xlu0 %1886
  %1890 = vset.pattern.permute.xlu0 0
  %1891 = vperm.xlu0 %1890, %v1808
  %v1892 = vpop.permute.xlu0 %1891
  %1895 = vset.pattern.permute.xlu0 0
  %1896 = vperm.xlu0 %1895, %v1810
  %v1897 = vpop.permute.xlu0 %1896
  %1900 = vset.pattern.permute.xlu0 0
  %1901 = vperm.xlu0 %1900, %v1812
  %v1902 = vpop.permute.xlu0 %1901
  %1905 = vset.pattern.permute.xlu0 0
  %1906 = vperm.xlu0 %1905, %v1814
  %v1907 = vpop.permute.xlu0 %1906
  %1910 = vset.pattern.permute.xlu0 0
  %1911 = vperm.xlu0 %1910, %v1816
  %v1912 = vpop.permute.xlu0 %1911
  %1915 = vset.pattern.permute.xlu0 0
  %1916 = vperm.xlu0 %1915, %v1818
  %v1917 = vpop.permute.xlu0 %1916
  %1920 = vset.pattern.permute.xlu0 0
  %1921 = vperm.xlu0 %1920, %v1820
  %v1922 = vpop.permute.xlu0 %1921
  %1925 = vset.pattern.permute.xlu0 0
  %1926 = vperm.xlu0 %1925, %v1822
  %v1927 = vpop.permute.xlu0 %1926
  %1930 = vset.pattern.permute.xlu0 0
  %1931 = vperm.xlu0 %1930, %v1824
  %v1932 = vpop.permute.xlu0 %1931
  %1935 = vset.pattern.permute.xlu0 0
  %1936 = vperm.xlu0 %1935, %v1826
  %v1937 = vpop.permute.xlu0 %1936
  %1940 = vset.pattern.permute.xlu0 0
  %1941 = vperm.xlu0 %1940, %v1828
  %v1942 = vpop.permute.xlu0 %1941
  %1945 = vset.pattern.permute.xlu0 0
  %1946 = vperm.xlu0 %1945, %v1830
  %v1947 = vpop.permute.xlu0 %1946
  %1950 = vset.pattern.permute.xlu0 0
  %1951 = vperm.xlu0 %1950, %v1832
  %v1952 = vpop.permute.xlu0 %1951
  %1955 = vset.pattern.permute.xlu0 0
  %1956 = vperm.xlu0 %1955, %v1834
  %v1957 = vpop.permute.xlu0 %1956
  %1960 = vset.pattern.permute.xlu0 0
  %1961 = vperm.xlu0 %1960, %v1836
  %v1962 = vpop.permute.xlu0 %1961
  %1965 = vset.pattern.permute.xlu0 0
  %1966 = vperm.xlu0 %1965, %v1838
  %v1967 = vpop.permute.xlu0 %1966
  %1970 = vset.pattern.permute.xlu0 0
  %1971 = vperm.xlu0 %1970, %v1840
  %v1972 = vpop.permute.xlu0 %1971
  %1975 = vset.pattern.permute.xlu0 0
  %1976 = vperm.xlu0 %1975, %v1842
  %v1977 = vpop.permute.xlu0 %1976
  %1980 = vset.pattern.permute.xlu0 0
  %1981 = vperm.xlu0 %1980, %v1844
  %v1982 = vpop.permute.xlu0 %1981
  %1985 = vset.pattern.permute.xlu0 0
  %1986 = vperm.xlu0 %1985, %v1846
  %v1987 = vpop.permute.xlu0 %1986
  %1990 = vset.pattern.permute.xlu0 0
  %1991 = vperm.xlu0 %1990, %v1848
  %v1992 = vpop.permute.xlu0 %1991
  %1995 = vset.pattern.permute.xlu0 0
  %1996 = vperm.xlu0 %1995, %v1850
  %v1997 = vpop.permute.xlu0 %1996
  %2000 = vset.pattern.permute.xlu0 0
  %2001 = vperm.xlu0 %2000, %v1852
  %v2002 = vpop.permute.xlu0 %2001
  %2005 = vset.pattern.permute.xlu0 0
  %2006 = vperm.xlu0 %2005, %v1854
  %v2007 = vpop.permute.xlu0 %2006
  %2010 = vset.pattern.permute.xlu0 0
  %2011 = vperm.xlu0 %2010, %v1856
  %v2012 = vpop.permute.xlu0 %2011
  %2015 = vset.pattern.permute.xlu0 0
  %2016 = vperm.xlu0 %2015, %v1858
  %v2017 = vpop.permute.xlu0 %2016
  %2019 = vst [vmem:[%s12] sm:$0xff] %v1862
  %2020 = vst [vmem:[%s12 + $0x8] sm:$0xff] %v1867
  %2021 = vst [vmem:[%s12 + $0x10] sm:$0xff] %v1872
  %2022 = vst [vmem:[%s12 + $0x18] sm:$0xff] %v1877
  %2023 = vst [vmem:[%s12 + $0x20] sm:$0xff] %v1882
  %2024 = vst [vmem:[%s12 + $0x28] sm:$0xff] %v1887
  %2025 = vst [vmem:[%s12 + $0x30] sm:$0xff] %v1892
  %2026 = vst [vmem:[%s12 + $0x38] sm:$0xff] %v1897
  %2027 = vst [vmem:[%s12 + $0x40] sm:$0xff] %v1902
  %2028 = vst [vmem:[%s12 + $0x48] sm:$0xff] %v1907
  %2029 = vst [vmem:[%s12 + $0x50] sm:$0xff] %v1912
  %2030 = vst [vmem:[%s12 + $0x58] sm:$0xff] %v1917
  %2031 = vst [vmem:[%s12 + $0x60] sm:$0xff] %v1922
  %2032 = vst [vmem:[%s12 + $0x68] sm:$0xff] %v1927
  %2033 = vst [vmem:[%s12 + $0x70] sm:$0xff] %v1932
  %2034 = vst [vmem:[%s12 + $0x78] sm:$0xff] %v1937
  %2035 = vst [vmem:[%s12 + $0x80] sm:$0xff] %v1942
  %2036 = vst [vmem:[%s12 + $0x88] sm:$0xff] %v1947
  %2037 = vst [vmem:[%s12 + $0x90] sm:$0xff] %v1952
  %2038 = vst [vmem:[%s12 + $0x98] sm:$0xff] %v1957
  %2039 = vst [vmem:[%s12 + $0xa0] sm:$0xff] %v1962
  %2040 = vst [vmem:[%s12 + $0xa8] sm:$0xff] %v1967
  %2041 = vst [vmem:[%s12 + $0xb0] sm:$0xff] %v1972
  %2042 = vst [vmem:[%s12 + $0xb8] sm:$0xff] %v1977
  %2043 = vst [vmem:[%s12 + $0xc0] sm:$0xff] %v1982
  %2044 = vst [vmem:[%s12 + $0xc8] sm:$0xff] %v1987
  %2045 = vst [vmem:[%s12 + $0xd0] sm:$0xff] %v1992
  %2046 = vst [vmem:[%s12 + $0xd8] sm:$0xff] %v1997
  %2047 = vst [vmem:[%s12 + $0xe0] sm:$0xff] %v2002
  %2048 = vst [vmem:[%s12 + $0xe8] sm:$0xff] %v2007
  %2049 = vst [vmem:[%s12 + $0xf0] sm:$0xff] %v2012
  %2050 = vst [vmem:[%s12 + $0xf8] sm:$0xff] %v2017
  // Predicated region
  $region46: #{information_integration.1} parent=0 // pred_check
    _
  $region47: #{information_integration.1} parent=0 // pred_check_branch
    %2052 = sbr.rel (0) target = $region49
  $region48: #{information_integration.1} parent=0 // pred_region
    _
  $region49: #{information_integration.1} parent=0 // pred_fallthru
    _
  // Predicated region
  $region50: #{information_integration.1} parent=0 // pred_check
    _
  $region51: #{information_integration.1} parent=0 // pred_check_branch
    %2054 = sbr.rel (0) target = $region53
  $region52: #{information_integration.1} parent=0 // pred_region
    _
  $region53: #{information_integration.1} parent=0 // pred_fallthru
    _
  // Predicated region
  $region54: #{information_integration.1} parent=0 // pred_check
    _
  $region55: #{information_integration.1} parent=0 // pred_check_branch
    %2056 = sbr.rel (0) target = $region57
  $region56: #{information_integration.1} parent=0 // pred_region
    _
  $region57: #{information_integration.1} parent=0 // pred_fallthru
    _
  // Predicated region
  $region58: #{information_integration.1} parent=0 // pred_check
    _
  $region59: #{information_integration.1} parent=0 // pred_check_branch
    %2058 = sbr.rel (0) target = $region61
  $region60: #{information_integration.1} parent=0 // pred_region
    _
  $region61: #{information_integration.1} parent=0 // pred_fallthru
    _

</llo_original>
